<compile_context>
chip_gen: v5e
topology: v5e:2x2
jax: 0.10.0
libtpu: 0.0.40
codegen_flags: <defaults>
</compile_context>

<pallas_src>
import math
import jax
import jax.numpy as jnp
from jax.experimental import pallas as pl
from jax.experimental.pallas import tpu as pltpu

DROPOUT_P = 0.9
KEEP_PROB = 1.0 - DROPOUT_P
# keep iff (24-bit random value) < KEEP_PROB * 2^24
_KEEP_THRESHOLD_24 = int(KEEP_PROB * float(1 << 24))

# murmur3 fmix32 constants as int32 (two's complement); int32 multiplies wrap
# mod 2^32 (XLA/Mosaic define overflow modularly), which is what we want.
_C_SEED = -1640531535   # 0x9E3779B1
_C_MIX1 = -2048144789   # 0x85EBCA6B
_C_MIX2 = -1028477387   # 0xC2B2AE35


def _make_attention_kernel(seed: int, use_hw_prng: bool):
    """Build the fused attention+dropout kernel.

    `seed` is baked in as a trace-time constant (no scalar prefetch / SMEM
    plumbing -- index maps never depend on it).
    """

    def kernel(q_ref, k_ref, v_ref, o_ref):
        # q_ref: (BH, Sq, D), k_ref/v_ref: (BH, Sk, D), o_ref: (BH, Sq, D)
        q = q_ref[...]
        k = k_ref[...]
        v = v_ref[...]

        bh, sq, d = q.shape
        sk = k.shape[1]

        # Fold 1/sqrt(Sk) into q (Sq*D elements, not Sq*Sk logits), then feed
        # the MXU with bf16 operands / f32 accumulation.
        inv_scale = 1.0 / math.sqrt(sk)
        qb = (q * inv_scale).astype(jnp.bfloat16)
        kb = k.astype(jnp.bfloat16)

        # s[b, q, k] = sum_d qb[b, q, d] * kb[b, k, d]   (no materialized k^T)
        s = jnp.einsum("bqd,bkd->bqk", qb, kb,
                       preferred_element_type=jnp.float32)

        # Softmax along the last dim. The normalizing divide goes to the EUP
        # (approx reciprocal) and the 1/keep_prob dropout scale is folded into
        # the same per-row scale -> no extra full-tile VPU multiply.
        m = jnp.max(s, axis=-1, keepdims=True)
        e = jnp.exp(s - m)
        denom = jnp.sum(e, axis=-1, keepdims=True)
        row_scale = pl.reciprocal(denom, approx=True) * (1.0 / KEEP_PROB)

        # --- dropout(p=0.9) keep mask ---
        if use_hw_prng:
            # Hardware PRNG: ~1 op per vreg (vs ~12 for the hash chain).
            pltpu.prng_seed(jnp.int32(seed))
            bits = pltpu.prng_random_bits(s.shape)
            keep = (bits & 0x00FFFFFF) < _KEEP_THRESHOLD_24  # P(keep) = 0.1
        else:
            # Portable stateless counter hash (non-TPU / interpret fallback).
            b_i = jax.lax.broadcasted_iota(jnp.int32, s.shape, 0)
            r_i = jax.lax.broadcasted_iota(jnp.int32, s.shape, 1)
            c_i = jax.lax.broadcasted_iota(jnp.int32, s.shape, 2)
            idx = (b_i * sq + r_i) * sk + c_i                 # unique elem id
            h = (idx + jnp.int32(seed)) * jnp.int32(_C_SEED)  # wraps mod 2^32
            h = h ^ ((h >> 16) & 0xFFFF)                      # logical >> 16
            h = h * jnp.int32(_C_MIX1)
            h = h ^ ((h >> 13) & 0x7FFFF)                     # logical >> 13
            h = h * jnp.int32(_C_MIX2)
            h = h ^ ((h >> 16) & 0xFFFF)                      # logical >> 16
            keep = (h & 0x00FFFFFF) < _KEEP_THRESHOLD_24      # P(keep) = 0.1

        p = jnp.where(keep, e * row_scale, 0.0)

        # v6 = dropout(softmax) @ v  (bf16 operands, f32 accumulation on MXU)
        out = jnp.einsum("bqk,bkd->bqd", p.astype(jnp.bfloat16),
                         v.astype(jnp.bfloat16),
                         preferred_element_type=jnp.float32)
        o_ref[...] = out.astype(o_ref.dtype)

    return kernel


def sdp_attention_dropout(q, k, v, seed=0):
    """q: [B, H, Sq, D], k/v: [B, H, Sk, D] -> [B, H, Sq, D]."""
    B, H, Sq, D = q.shape
    _, _, Sk, _ = k.shape
    BH = B * H

    qf = q.reshape(BH, Sq, D)
    kf = k.reshape(BH, Sk, D)
    vf = v.reshape(BH, Sk, D)

    use_hw_prng = jax.default_backend() == "tpu"
    kernel = _make_attention_kernel(int(seed), use_hw_prng)

    # Single grid step: total work is ~4 MFLOP / ~200 KiB, so the whole
    # problem fits one invocation.  Per-step pipeline overhead (~0.35 us)
    # would be a measurable fraction of wall time on 1-TC chips (v5e/v6e);
    # even on v7x (2 TCs) the split is not worth it at this latency-bound
    # size.  Block shapes equal full array dims, so the (8,128) divisibility
    # rule is satisfied trivially.
    out = pl.pallas_call(
        kernel,
        out_shape=jax.ShapeDtypeStruct((BH, Sq, D), q.dtype),
        grid=(1,),
        in_specs=[
            pl.BlockSpec((BH, Sq, D), lambda i: (0, 0, 0)),
            pl.BlockSpec((BH, Sk, D), lambda i: (0, 0, 0)),
            pl.BlockSpec((BH, Sk, D), lambda i: (0, 0, 0)),
        ],
        out_specs=pl.BlockSpec((BH, Sq, D), lambda i: (0, 0, 0)),
        compiler_params=pltpu.CompilerParams(
            dimension_semantics=("arbitrary",)),
    )(qf, kf, vf)

    return out.reshape(B, H, Sq, D)


if __name__ == "__main__":
    # Original spec has q1 with 3 heads vs 4 for k2/v3 (does not broadcast
    # under torch.matmul); consistent small attention shapes are used.
    B, H, S, D = 1, 4, 64, 64
    key = jax.random.PRNGKey(0)
    kq, kk, kv = jax.random.split(key, 3)
    q1 = jax.random.normal(kq, (B, H, S, D), dtype=jnp.float32)
    k2 = jax.random.normal(kk, (B, H, S, D), dtype=jnp.float32)
    v3 = jax.random.normal(kv, (B, H, S, D), dtype=jnp.float32)

    out = sdp_attention_dropout(q1, k2, v3, seed=0)
    out = jax.block_until_ready(out)
    assert out.shape == (B, H, S, D)
    assert bool(jnp.all(jnp.isfinite(out)))
    print("KERNEL_OK")
</pallas_src>

<mosaic_0001>
module attributes {stable_mosaic.version = 11 : i64} {
  func.func @kernel(%arg0: i32, %arg1: memref<4x64x64xf32, #tpu.memory_space<vmem>>, %arg2: memref<4x64x64xf32, #tpu.memory_space<vmem>>, %arg3: memref<4x64x64xf32, #tpu.memory_space<vmem>>, %arg4: memref<4x64x64xf32, #tpu.memory_space<vmem>>) attributes {dimension_semantics = [#tpu.dimension_semantics<arbitrary>], iteration_bounds = array<i64: 1>, scalar_prefetch = 0 : i64, scratch_operands = 0 : i64, tpu.core_type = #tpu.core_type<tc>, window_params = [{pipeline_mode = #tpu.pipeline_mode<synchronous>, transform_indices = @transform_0, window_bounds = array<i64: 4, 64, 64>}, {pipeline_mode = #tpu.pipeline_mode<synchronous>, transform_indices = @transform_1, window_bounds = array<i64: 4, 64, 64>}, {pipeline_mode = #tpu.pipeline_mode<synchronous>, transform_indices = @transform_2, window_bounds = array<i64: 4, 64, 64>}, {pipeline_mode = #tpu.pipeline_mode<synchronous>, transform_indices = @transform_3, window_bounds = array<i64: 4, 64, 64>}]} {
    %c0 = arith.constant 0 : index
    %c0_0 = arith.constant 0 : index
    %c0_1 = arith.constant 0 : index
    %0 = vector.load %arg1[%c0, %c0_0, %c0_1] : memref<4x64x64xf32, #tpu.memory_space<vmem>>, vector<4x64x64xf32>
    %c0_2 = arith.constant 0 : index
    %c0_3 = arith.constant 0 : index
    %c0_4 = arith.constant 0 : index
    %1 = vector.load %arg2[%c0_2, %c0_3, %c0_4] : memref<4x64x64xf32, #tpu.memory_space<vmem>>, vector<4x64x64xf32>
    %c0_5 = arith.constant 0 : index
    %c0_6 = arith.constant 0 : index
    %c0_7 = arith.constant 0 : index
    %2 = vector.load %arg3[%c0_5, %c0_6, %c0_7] : memref<4x64x64xf32, #tpu.memory_space<vmem>>, vector<4x64x64xf32>
    %cst = arith.constant 1.250000e-01 : f32
    %3 = vector.broadcast %cst : f32 to vector<4x64x64xf32>
    %4 = arith.mulf %0, %3 : vector<4x64x64xf32>
    %5 = arith.truncf %4 : vector<4x64x64xf32> to vector<4x64x64xbf16>
    %6 = arith.truncf %1 : vector<4x64x64xf32> to vector<4x64x64xbf16>
    "tpu.trace_start"() <{level = 10 : i32, message = "bqd,bkd->bqk"}> : () -> ()
    %cst_8 = arith.constant dense<0.000000e+00> : vector<4x64x64xf32>
    %7 = tpu.matmul %5, %6, %cst_8 {dimension_numbers = #tpu.dot_dimension_numbers<[2], [2], [1], [1], [0, 0, 0, 1, 1, 1], [0], [0]>} : vector<4x64x64xbf16>, vector<4x64x64xbf16>, vector<4x64x64xf32> -> vector<4x64x64xf32>
    "tpu.trace_stop"() : () -> ()
    %cst_9 = arith.constant dense<0xFF800000> : vector<4x64xf32>
    %8 = vector.multi_reduction <maximumf>, %7, %cst_9 [2] : vector<4x64x64xf32> to vector<4x64xf32>
    %9 = vector.shape_cast %8 : vector<4x64xf32> to vector<4x64x1xf32>
    %10 = vector.broadcast %9 : vector<4x64x1xf32> to vector<4x64x64xf32>
    %11 = arith.subf %7, %10 : vector<4x64x64xf32>
    %12 = math.exp %11 : vector<4x64x64xf32>
    %cst_10 = arith.constant dense<0.000000e+00> : vector<4x64xf32>
    %13 = vector.multi_reduction <add>, %12, %cst_10 [2] : vector<4x64x64xf32> to vector<4x64xf32>
    %14 = vector.shape_cast %13 : vector<4x64xf32> to vector<4x64x1xf32>
    %15 = tpu.reciprocal %14 {approx = true} : vector<4x64x1xf32> -> vector<4x64x1xf32>
    %cst_11 = arith.constant 1.000000e+01 : f32
    %16 = vector.broadcast %cst_11 : f32 to vector<4x64x1xf32>
    %17 = arith.mulf %15, %16 : vector<4x64x1xf32>
    %18 = tpu.iota {dimensions = array<i32: 0>} : vector<4x64x64xi32>
    %19 = tpu.iota {dimensions = array<i32: 1>} : vector<4x64x64xi32>
    %20 = tpu.iota {dimensions = array<i32: 2>} : vector<4x64x64xi32>
    %c64_i32 = arith.constant 64 : i32
    %21 = vector.broadcast %c64_i32 : i32 to vector<4x64x64xi32>
    %22 = arith.muli %18, %21 : vector<4x64x64xi32>
    %23 = arith.addi %22, %19 : vector<4x64x64xi32>
    %c64_i32_12 = arith.constant 64 : i32
    %24 = vector.broadcast %c64_i32_12 : i32 to vector<4x64x64xi32>
    %25 = arith.muli %23, %24 : vector<4x64x64xi32>
    %26 = arith.addi %25, %20 : vector<4x64x64xi32>
    %c0_i32 = arith.constant 0 : i32
    %27 = vector.broadcast %c0_i32 : i32 to vector<4x64x64xi32>
    %28 = arith.addi %26, %27 : vector<4x64x64xi32>
    %c-1640531535_i32 = arith.constant -1640531535 : i32
    %29 = vector.broadcast %c-1640531535_i32 : i32 to vector<4x64x64xi32>
    %30 = arith.muli %28, %29 : vector<4x64x64xi32>
    %c16_i32 = arith.constant 16 : i32
    %31 = vector.broadcast %c16_i32 : i32 to vector<4x64x64xi32>
    %32 = arith.shrsi %30, %31 : vector<4x64x64xi32>
    %c65535_i32 = arith.constant 65535 : i32
    %33 = vector.broadcast %c65535_i32 : i32 to vector<4x64x64xi32>
    %34 = arith.andi %32, %33 : vector<4x64x64xi32>
    %35 = arith.xori %30, %34 : vector<4x64x64xi32>
    %c-2048144789_i32 = arith.constant -2048144789 : i32
    %36 = vector.broadcast %c-2048144789_i32 : i32 to vector<4x64x64xi32>
    %37 = arith.muli %35, %36 : vector<4x64x64xi32>
    %c13_i32 = arith.constant 13 : i32
    %38 = vector.broadcast %c13_i32 : i32 to vector<4x64x64xi32>
    %39 = arith.shrsi %37, %38 : vector<4x64x64xi32>
    %c524287_i32 = arith.constant 524287 : i32
    %40 = vector.broadcast %c524287_i32 : i32 to vector<4x64x64xi32>
    %41 = arith.andi %39, %40 : vector<4x64x64xi32>
    %42 = arith.xori %37, %41 : vector<4x64x64xi32>
    %c-1028477387_i32 = arith.constant -1028477387 : i32
    %43 = vector.broadcast %c-1028477387_i32 : i32 to vector<4x64x64xi32>
    %44 = arith.muli %42, %43 : vector<4x64x64xi32>
    %c16_i32_13 = arith.constant 16 : i32
    %45 = vector.broadcast %c16_i32_13 : i32 to vector<4x64x64xi32>
    %46 = arith.shrsi %44, %45 : vector<4x64x64xi32>
    %c65535_i32_14 = arith.constant 65535 : i32
    %47 = vector.broadcast %c65535_i32_14 : i32 to vector<4x64x64xi32>
    %48 = arith.andi %46, %47 : vector<4x64x64xi32>
    %49 = arith.xori %44, %48 : vector<4x64x64xi32>
    %c16777215_i32 = arith.constant 16777215 : i32
    %50 = vector.broadcast %c16777215_i32 : i32 to vector<4x64x64xi32>
    %51 = arith.andi %49, %50 : vector<4x64x64xi32>
    %c1677721_i32 = arith.constant 1677721 : i32
    %52 = vector.broadcast %c1677721_i32 : i32 to vector<4x64x64xi32>
    %53 = arith.cmpi slt, %51, %52 : vector<4x64x64xi32>
    %54 = vector.broadcast %17 : vector<4x64x1xf32> to vector<4x64x64xf32>
    %55 = arith.mulf %12, %54 : vector<4x64x64xf32>
    %cst_15 = arith.constant 0.000000e+00 : f32
    %56 = vector.broadcast %cst_15 : f32 to vector<4x64x64xf32>
    %57 = arith.select %53, %55, %56 : vector<4x64x64xi1>, vector<4x64x64xf32>
    %58 = arith.truncf %57 : vector<4x64x64xf32> to vector<4x64x64xbf16>
    %59 = arith.truncf %2 : vector<4x64x64xf32> to vector<4x64x64xbf16>
    "tpu.trace_start"() <{level = 10 : i32, message = "bqk,bkd->bqd"}> : () -> ()
    %cst_16 = arith.constant dense<0.000000e+00> : vector<4x64x64xf32>
    %60 = tpu.matmul %58, %59, %cst_16 {dimension_numbers = #tpu.dot_dimension_numbers<[2], [1], [1], [2], [0, 0, 0, 1, 1, 2], [0], [0]>} : vector<4x64x64xbf16>, vector<4x64x64xbf16>, vector<4x64x64xf32> -> vector<4x64x64xf32>
    "tpu.trace_stop"() : () -> ()
    %c0_17 = arith.constant 0 : index
    %c0_18 = arith.constant 0 : index
    %c0_19 = arith.constant 0 : index
    %61 = vector.load %arg4[%c0_17, %c0_18, %c0_19] : memref<4x64x64xf32, #tpu.memory_space<vmem>>, vector<4x64x64xf32>
    tpu.vector_store %arg4[%c0_17, %c0_18, %c0_19], %60 {strides = array<i32>} : memref<4x64x64xf32, #tpu.memory_space<vmem>>, vector<4x64x64xf32>,
    return
  }
  func.func @transform_0(%arg0: i32) -> (i32, i32, i32) {
    %c0_i32 = arith.constant 0 : i32
    %c0_i32_0 = arith.constant 0 : i32
    %c0_i32_1 = arith.constant 0 : i32
    %c0_i32_2 = arith.constant 0 : i32
    return %c0_i32, %c0_i32_0, %c0_i32_1 : i32, i32, i32
  }
  func.func @transform_1(%arg0: i32) -> (i32, i32, i32) {
    %c0_i32 = arith.constant 0 : i32
    %c0_i32_0 = arith.constant 0 : i32
    %c0_i32_1 = arith.constant 0 : i32
    %c0_i32_2 = arith.constant 0 : i32
    return %c0_i32, %c0_i32_0, %c0_i32_1 : i32, i32, i32
  }
  func.func @transform_2(%arg0: i32) -> (i32, i32, i32) {
    %c0_i32 = arith.constant 0 : i32
    %c0_i32_0 = arith.constant 0 : i32
    %c0_i32_1 = arith.constant 0 : i32
    %c0_i32_2 = arith.constant 0 : i32
    return %c0_i32, %c0_i32_0, %c0_i32_1 : i32, i32, i32
  }
  func.func @transform_3(%arg0: i32) -> (i32, i32, i32) {
    %c0_i32 = arith.constant 0 : i32
    %c0_i32_0 = arith.constant 0 : i32
    %c0_i32_1 = arith.constant 0 : i32
    %c0_i32_2 = arith.constant 0 : i32
    return %c0_i32, %c0_i32_0, %c0_i32_1 : i32, i32, i32
  }
}

</mosaic_0001>

<llo_original>
// kernel: tpu_custom_call.1
$region0: #{tpu_custom_call.1}
  #allocation0 [shape = 'u32[]', space=smem, size = 0x4, offset = 0x4, fixed_abs, tag = 'smem constant byte address 0x4 - core index']
  #allocation1 [shape = 'u32[72,128]{1,0:T(1,128)}', space=vmem, size = 0x9000, scoped, tag = 'internal scratch']
  %s0 = inlined_call_operand.hbm [shape: f32[4,64,64], index: 0, kind: input, shape index: {}]
  %s1 = inlined_call_operand.hbm [shape: f32[4,64,64], index: 1, kind: input, shape index: {}]
  %s2 = inlined_call_operand.hbm [shape: f32[4,64,64], index: 2, kind: input, shape index: {}]
  %s3 = inlined_call_operand.hbm [shape: f32[4,64,64], index: 3, kind: output, shape index: {}]
  %s4 = sld [smem:[#allocation0]]
  $region34: #{tpu_custom_call.1} parent=0
    _
  %s6 = ssub.s32 1, %s4
  %s7 = scalar_select 0, %s6, %s4
  $region1: #{tpu_custom_call.1} parent=0
    #allocation2 [shape = 'u8[131072]{0}', space=vmem, size = 0x20000, scoped, tag = 'input window, operand 0, single buffered']
    #allocation3 [shape = 's32[1]{0}', space=sflag, size = 0x4, scoped, tag = 'scoped memory for tpu_custom_call.1']
    #allocation4 [shape = 's32[1]{0}', space=sflag, size = 0x4, scoped, tag = 'scoped memory for tpu_custom_call.1']
    #allocation5 [shape = 'u8[131072]{0}', space=vmem, size = 0x20000, scoped, tag = 'input window, operand 1, single buffered']
    #allocation6 [shape = 's32[1]{0}', space=sflag, size = 0x4, scoped, tag = 'scoped memory for tpu_custom_call.1']
    #allocation7 [shape = 'u8[131072]{0}', space=vmem, size = 0x20000, scoped, tag = 'input window, operand 2, single buffered']
    #allocation8 [shape = 'u8[131072]{0}', space=vmem, size = 0x20000, scoped, tag = 'output window, operand 0, single buffered']
    %8 = vsyncpa [#allocation3], 0
    %9 = vsyncpa [#allocation6], 0
    %10 = vsyncpa [#allocation4], 0
    // Predicated region
    $region2: #{tpu_custom_call.1} parent=1 // pred_check
      _
    $region3: #{tpu_custom_call.1} parent=1 // pred_check_branch
      %12 = sbr.rel (0) target = $region5
    $region4: #{tpu_custom_call.1} parent=1 // pred_region
      %14 = vsyncadd [#allocation3], 0
      %s15 = sshll.u32 %s0, 4
      %s16 = int_to_ptr.hbm [resolvable:$true] %s15
      %s17 = sshll.u32 [#allocation2], 4
      %s18 = int_to_ptr.vmem [resolvable:$true] %s17
      %23 = dma.hbm_to_vmem [thread:$0]  %s16, 4096, %s18, [#allocation3], 128, 128, 8
    $region5: #{tpu_custom_call.1} parent=1 // pred_fallthru
      _
    // Predicated region
    $region6: #{tpu_custom_call.1} parent=1 // pred_check
      _
    $region7: #{tpu_custom_call.1} parent=1 // pred_check_branch
      %25 = sbr.rel (0) target = $region9
    $region8: #{tpu_custom_call.1} parent=1 // pred_region
      %27 = vsyncadd [#allocation6], 0
      %s28 = sshll.u32 %s1, 4
      %s29 = int_to_ptr.hbm [resolvable:$true] %s28
      %s30 = sshll.u32 [#allocation5], 4
      %s31 = int_to_ptr.vmem [resolvable:$true] %s30
      %36 = dma.hbm_to_vmem [thread:$0]  %s29, 4096, %s31, [#allocation6], 128, 128, 8
    $region9: #{tpu_custom_call.1} parent=1 // pred_fallthru
      _
    // Predicated region
    $region10: #{tpu_custom_call.1} parent=1 // pred_check
      _
    $region11: #{tpu_custom_call.1} parent=1 // pred_check_branch
      %38 = sbr.rel (0) target = $region13
    $region12: #{tpu_custom_call.1} parent=1 // pred_region
      %40 = vsyncadd [#allocation6], 0
      %s41 = sshll.u32 %s2, 4
      %s42 = int_to_ptr.hbm [resolvable:$true] %s41
      %s43 = sshll.u32 [#allocation7], 4
      %s44 = int_to_ptr.vmem [resolvable:$true] %s43
      %49 = dma.hbm_to_vmem [thread:$0]  %s42, 4096, %s44, [#allocation6], 128, 128, 8
    $region13: #{tpu_custom_call.1} parent=1 // pred_fallthru
      _
    // Predicated region
    $region14: #{tpu_custom_call.1} parent=1 // pred_check
      _
    $region15: #{tpu_custom_call.1} parent=1 // pred_check_branch
      %51 = sbr.rel (0) target = $region17
    $region16: #{tpu_custom_call.1} parent=1 // pred_region
      %53 = dma.done [#allocation3], 4096
    $region17: #{tpu_custom_call.1} parent=1 // pred_fallthru
      _
    // Predicated region
    $region18: #{tpu_custom_call.1} parent=1 // pred_check
      _
    $region19: #{tpu_custom_call.1} parent=1 // pred_check_branch
      %55 = sbr.rel (0) target = $region21
    $region20: #{tpu_custom_call.1} parent=1 // pred_region
      %57 = dma.done [#allocation6], 4096
    $region21: #{tpu_custom_call.1} parent=1 // pred_fallthru
      _
    // Predicated region
    $region22: #{tpu_custom_call.1} parent=1 // pred_check
      _
    $region23: #{tpu_custom_call.1} parent=1 // pred_check_branch
      %59 = sbr.rel (0) target = $region25
    $region24: #{tpu_custom_call.1} parent=1 // pred_region
      %61 = dma.done [#allocation6], 4096
    $region25: #{tpu_custom_call.1} parent=1 // pred_fallthru
      _
    %v63 = vld [vmem:[#allocation2] sm:$0xff]
    %v64 = vld [vmem:[#allocation2 + $0x8] sm:$0xff]
    %v65 = vld [vmem:[#allocation2 + $0x10] sm:$0xff]
    %v66 = vld [vmem:[#allocation2 + $0x18] sm:$0xff]
    %v67 = vld [vmem:[#allocation2 + $0x20] sm:$0xff]
    %v68 = vld [vmem:[#allocation2 + $0x28] sm:$0xff]
    %v69 = vld [vmem:[#allocation2 + $0x30] sm:$0xff]
    %v70 = vld [vmem:[#allocation2 + $0x38] sm:$0xff]
    %v71 = vld [vmem:[#allocation2 + $0x40] sm:$0xff]
    %v72 = vld [vmem:[#allocation2 + $0x48] sm:$0xff]
    %v73 = vld [vmem:[#allocation2 + $0x50] sm:$0xff]
    %v74 = vld [vmem:[#allocation2 + $0x58] sm:$0xff]
    %v75 = vld [vmem:[#allocation2 + $0x60] sm:$0xff]
    %v76 = vld [vmem:[#allocation2 + $0x68] sm:$0xff]
    %v77 = vld [vmem:[#allocation2 + $0x70] sm:$0xff]
    %v78 = vld [vmem:[#allocation2 + $0x78] sm:$0xff]
    %v79 = vld [vmem:[#allocation2 + $0x80] sm:$0xff]
    %v80 = vld [vmem:[#allocation2 + $0x88] sm:$0xff]
    %v81 = vld [vmem:[#allocation2 + $0x90] sm:$0xff]
    %v82 = vld [vmem:[#allocation2 + $0x98] sm:$0xff]
    %v83 = vld [vmem:[#allocation2 + $0xa0] sm:$0xff]
    %v84 = vld [vmem:[#allocation2 + $0xa8] sm:$0xff]
    %v85 = vld [vmem:[#allocation2 + $0xb0] sm:$0xff]
    %v86 = vld [vmem:[#allocation2 + $0xb8] sm:$0xff]
    %v87 = vld [vmem:[#allocation2 + $0xc0] sm:$0xff]
    %v88 = vld [vmem:[#allocation2 + $0xc8] sm:$0xff]
    %v89 = vld [vmem:[#allocation2 + $0xd0] sm:$0xff]
    %v90 = vld [vmem:[#allocation2 + $0xd8] sm:$0xff]
    %v91 = vld [vmem:[#allocation2 + $0xe0] sm:$0xff]
    %v92 = vld [vmem:[#allocation2 + $0xe8] sm:$0xff]
    %v93 = vld [vmem:[#allocation2 + $0xf0] sm:$0xff]
    %v94 = vld [vmem:[#allocation2 + $0xf8] sm:$0xff]
    %v95 = vld [vmem:[#allocation5] sm:$0xff]
    %v96 = vld [vmem:[#allocation5 + $0x8] sm:$0xff]
    %v97 = vld [vmem:[#allocation5 + $0x10] sm:$0xff]
    %v98 = vld [vmem:[#allocation5 + $0x18] sm:$0xff]
    %v99 = vld [vmem:[#allocation5 + $0x20] sm:$0xff]
    %v100 = vld [vmem:[#allocation5 + $0x28] sm:$0xff]
    %v101 = vld [vmem:[#allocation5 + $0x30] sm:$0xff]
    %v102 = vld [vmem:[#allocation5 + $0x38] sm:$0xff]
    %v103 = vld [vmem:[#allocation5 + $0x40] sm:$0xff]
    %v104 = vld [vmem:[#allocation5 + $0x48] sm:$0xff]
    %v105 = vld [vmem:[#allocation5 + $0x50] sm:$0xff]
    %v106 = vld [vmem:[#allocation5 + $0x58] sm:$0xff]
    %v107 = vld [vmem:[#allocation5 + $0x60] sm:$0xff]
    %v108 = vld [vmem:[#allocation5 + $0x68] sm:$0xff]
    %v109 = vld [vmem:[#allocation5 + $0x70] sm:$0xff]
    %v110 = vld [vmem:[#allocation5 + $0x78] sm:$0xff]
    %v111 = vld [vmem:[#allocation5 + $0x80] sm:$0xff]
    %v112 = vld [vmem:[#allocation5 + $0x88] sm:$0xff]
    %v113 = vld [vmem:[#allocation5 + $0x90] sm:$0xff]
    %v114 = vld [vmem:[#allocation5 + $0x98] sm:$0xff]
    %v115 = vld [vmem:[#allocation5 + $0xa0] sm:$0xff]
    %v116 = vld [vmem:[#allocation5 + $0xa8] sm:$0xff]
    %v117 = vld [vmem:[#allocation5 + $0xb0] sm:$0xff]
    %v118 = vld [vmem:[#allocation5 + $0xb8] sm:$0xff]
    %v119 = vld [vmem:[#allocation5 + $0xc0] sm:$0xff]
    %v120 = vld [vmem:[#allocation5 + $0xc8] sm:$0xff]
    %v121 = vld [vmem:[#allocation5 + $0xd0] sm:$0xff]
    %v122 = vld [vmem:[#allocation5 + $0xd8] sm:$0xff]
    %v123 = vld [vmem:[#allocation5 + $0xe0] sm:$0xff]
    %v124 = vld [vmem:[#allocation5 + $0xe8] sm:$0xff]
    %v125 = vld [vmem:[#allocation5 + $0xf0] sm:$0xff]
    %v126 = vld [vmem:[#allocation5 + $0xf8] sm:$0xff]
    %v127 = vld [vmem:[#allocation7] sm:$0xff]
    %v128 = vld [vmem:[#allocation7 + $0x8] sm:$0xff]
    %v129 = vld [vmem:[#allocation7 + $0x10] sm:$0xff]
    %v130 = vld [vmem:[#allocation7 + $0x18] sm:$0xff]
    %v131 = vld [vmem:[#allocation7 + $0x20] sm:$0xff]
    %v132 = vld [vmem:[#allocation7 + $0x28] sm:$0xff]
    %v133 = vld [vmem:[#allocation7 + $0x30] sm:$0xff]
    %v134 = vld [vmem:[#allocation7 + $0x38] sm:$0xff]
    %v135 = vld [vmem:[#allocation7 + $0x40] sm:$0xff]
    %v136 = vld [vmem:[#allocation7 + $0x48] sm:$0xff]
    %v137 = vld [vmem:[#allocation7 + $0x50] sm:$0xff]
    %v138 = vld [vmem:[#allocation7 + $0x58] sm:$0xff]
    %v139 = vld [vmem:[#allocation7 + $0x60] sm:$0xff]
    %v140 = vld [vmem:[#allocation7 + $0x68] sm:$0xff]
    %v141 = vld [vmem:[#allocation7 + $0x70] sm:$0xff]
    %v142 = vld [vmem:[#allocation7 + $0x78] sm:$0xff]
    %v143 = vld [vmem:[#allocation7 + $0x80] sm:$0xff]
    %v144 = vld [vmem:[#allocation7 + $0x88] sm:$0xff]
    %v145 = vld [vmem:[#allocation7 + $0x90] sm:$0xff]
    %v146 = vld [vmem:[#allocation7 + $0x98] sm:$0xff]
    %v147 = vld [vmem:[#allocation7 + $0xa0] sm:$0xff]
    %v148 = vld [vmem:[#allocation7 + $0xa8] sm:$0xff]
    %v149 = vld [vmem:[#allocation7 + $0xb0] sm:$0xff]
    %v150 = vld [vmem:[#allocation7 + $0xb8] sm:$0xff]
    %v151 = vld [vmem:[#allocation7 + $0xc0] sm:$0xff]
    %v152 = vld [vmem:[#allocation7 + $0xc8] sm:$0xff]
    %v153 = vld [vmem:[#allocation7 + $0xd0] sm:$0xff]
    %v154 = vld [vmem:[#allocation7 + $0xd8] sm:$0xff]
    %v155 = vld [vmem:[#allocation7 + $0xe0] sm:$0xff]
    %v156 = vld [vmem:[#allocation7 + $0xe8] sm:$0xff]
    %v157 = vld [vmem:[#allocation7 + $0xf0] sm:$0xff]
    %v158 = vld [vmem:[#allocation7 + $0xf8] sm:$0xff]
    %v159 = vmul.f32 %v63, 0.125
    %v160 = vmul.f32 %v64, 0.125
    %v161 = vmul.f32 %v65, 0.125
    %v162 = vmul.f32 %v66, 0.125
    %v163 = vmul.f32 %v67, 0.125
    %v164 = vmul.f32 %v68, 0.125
    %v165 = vmul.f32 %v69, 0.125
    %v166 = vmul.f32 %v70, 0.125
    %v167 = vmul.f32 %v71, 0.125
    %v168 = vmul.f32 %v72, 0.125
    %v169 = vmul.f32 %v73, 0.125
    %v170 = vmul.f32 %v74, 0.125
    %v171 = vmul.f32 %v75, 0.125
    %v172 = vmul.f32 %v76, 0.125
    %v173 = vmul.f32 %v77, 0.125
    %v174 = vmul.f32 %v78, 0.125
    %v175 = vmul.f32 %v79, 0.125
    %v176 = vmul.f32 %v80, 0.125
    %v177 = vmul.f32 %v81, 0.125
    %v178 = vmul.f32 %v82, 0.125
    %v179 = vmul.f32 %v83, 0.125
    %v180 = vmul.f32 %v84, 0.125
    %v181 = vmul.f32 %v85, 0.125
    %v182 = vmul.f32 %v86, 0.125
    %v183 = vmul.f32 %v87, 0.125
    %v184 = vmul.f32 %v88, 0.125
    %v185 = vmul.f32 %v89, 0.125
    %v186 = vmul.f32 %v90, 0.125
    %v187 = vmul.f32 %v91, 0.125
    %v188 = vmul.f32 %v92, 0.125
    %v189 = vmul.f32 %v93, 0.125
    %v190 = vmul.f32 %v94, 0.125
    %v191 = vpack.c.bf16 %v159, %v159
    %v192 = vpack.c.bf16 %v160, %v160
    %v193 = vpack.c.bf16 %v161, %v161
    %v194 = vpack.c.bf16 %v162, %v162
    %v195 = vpack.c.bf16 %v163, %v163
    %v196 = vpack.c.bf16 %v164, %v164
    %v197 = vpack.c.bf16 %v165, %v165
    %v198 = vpack.c.bf16 %v166, %v166
    %v199 = vpack.c.bf16 %v167, %v167
    %v200 = vpack.c.bf16 %v168, %v168
    %v201 = vpack.c.bf16 %v169, %v169
    %v202 = vpack.c.bf16 %v170, %v170
    %v203 = vpack.c.bf16 %v171, %v171
    %v204 = vpack.c.bf16 %v172, %v172
    %v205 = vpack.c.bf16 %v173, %v173
    %v206 = vpack.c.bf16 %v174, %v174
    %v207 = vpack.c.bf16 %v175, %v175
    %v208 = vpack.c.bf16 %v176, %v176
    %v209 = vpack.c.bf16 %v177, %v177
    %v210 = vpack.c.bf16 %v178, %v178
    %v211 = vpack.c.bf16 %v179, %v179
    %v212 = vpack.c.bf16 %v180, %v180
    %v213 = vpack.c.bf16 %v181, %v181
    %v214 = vpack.c.bf16 %v182, %v182
    %v215 = vpack.c.bf16 %v183, %v183
    %v216 = vpack.c.bf16 %v184, %v184
    %v217 = vpack.c.bf16 %v185, %v185
    %v218 = vpack.c.bf16 %v186, %v186
    %v219 = vpack.c.bf16 %v187, %v187
    %v220 = vpack.c.bf16 %v188, %v188
    %v221 = vpack.c.bf16 %v189, %v189
    %v222 = vpack.c.bf16 %v190, %v190
    %v223 = vpack.c.bf16 %v95, %v95
    %v224 = vpack.c.bf16 %v96, %v96
    %v225 = vpack.c.bf16 %v97, %v97
    %v226 = vpack.c.bf16 %v98, %v98
    %v227 = vpack.c.bf16 %v99, %v99
    %v228 = vpack.c.bf16 %v100, %v100
    %v229 = vpack.c.bf16 %v101, %v101
    %v230 = vpack.c.bf16 %v102, %v102
    %v231 = vpack.c.bf16 %v103, %v103
    %v232 = vpack.c.bf16 %v104, %v104
    %v233 = vpack.c.bf16 %v105, %v105
    %v234 = vpack.c.bf16 %v106, %v106
    %v235 = vpack.c.bf16 %v107, %v107
    %v236 = vpack.c.bf16 %v108, %v108
    %v237 = vpack.c.bf16 %v109, %v109
    %v238 = vpack.c.bf16 %v110, %v110
    %v239 = vpack.c.bf16 %v111, %v111
    %v240 = vpack.c.bf16 %v112, %v112
    %v241 = vpack.c.bf16 %v113, %v113
    %v242 = vpack.c.bf16 %v114, %v114
    %v243 = vpack.c.bf16 %v115, %v115
    %v244 = vpack.c.bf16 %v116, %v116
    %v245 = vpack.c.bf16 %v117, %v117
    %v246 = vpack.c.bf16 %v118, %v118
    %v247 = vpack.c.bf16 %v119, %v119
    %v248 = vpack.c.bf16 %v120, %v120
    %v249 = vpack.c.bf16 %v121, %v121
    %v250 = vpack.c.bf16 %v122, %v122
    %v251 = vpack.c.bf16 %v123, %v123
    %v252 = vpack.c.bf16 %v124, %v124
    %v253 = vpack.c.bf16 %v125, %v125
    %v254 = vpack.c.bf16 %v126, %v126
    %v263 = vunpack.c.l.b16 %v191
    %v264 = vunpack.c.l.b16 %v192
    %v265 = vunpack.c.l.b16 %v193
    %v266 = vunpack.c.l.b16 %v194
    %v267 = vunpack.c.l.b16 %v195
    %v268 = vunpack.c.l.b16 %v196
    %v269 = vunpack.c.l.b16 %v197
    %v270 = vunpack.c.l.b16 %v198
    %v271 = vpack.c.b16 %v264, %v263
    %v272 = vpack.c.b16 %v266, %v265
    %v273 = vpack.c.b16 %v268, %v267
    %v274 = vpack.c.b16 %v270, %v269
    %v283 = vunpack.c.l.b16 %v223
    %v284 = vunpack.c.l.b16 %v224
    %v285 = vunpack.c.l.b16 %v225
    %v286 = vunpack.c.l.b16 %v226
    %v287 = vunpack.c.l.b16 %v227
    %v288 = vunpack.c.l.b16 %v228
    %v289 = vunpack.c.l.b16 %v229
    %v290 = vunpack.c.l.b16 %v230
    %v291 = vpack.c.b16 %v284, %v283
    %v292 = vpack.c.b16 %v286, %v285
    %v293 = vpack.c.b16 %v288, %v287
    %v294 = vpack.c.b16 %v290, %v289
    %vm295 = vcmask 523264
    %v297 = vsel %vm295, %v271, 0
    %v300 = vsel %vm295, %v272, 0
    %v303 = vsel %vm295, %v273, 0
    %v306 = vsel %vm295, %v274, 0
    %v309 = vsel %vm295, %v291, 0
    %v312 = vsel %vm295, %v292, 0
    %v315 = vsel %vm295, %v293, 0
    %v318 = vsel %vm295, %v294, 0
    %320 = vmatpush.bf16.xpose.msra.mxu0 0
    %321 = vmatpush.bf16.xpose.msra.mxu0 0
    %322 = vmatpush.bf16.xpose.msra.mxu0 0
    %323 = vmatpush.bf16.xpose.msra.mxu0 0
    %324 = vmatpush.bf16.xpose.msra.mxu0 %v318
    %325 = vmatpush.bf16.xpose.msra.mxu0 %v315
    %326 = vmatpush.bf16.xpose.msra.mxu0 %v312
    %327 = vmatpush.bf16.xpose.msra.mxu0 %v309
    %328 = vmatmul.bf16.gmra.mxu0 %v297
    %v329 = vpop.f32.mrf.mxu0
    %v330 = vadd.f32 0.0, %v329
    %v331 = vpop.f32.mrf.mxu0
    %v332 = vadd.f32 0.0, %v331
    %333 = vmatmul.bf16.gmra.mxu0 %v300
    %v334 = vpop.f32.mrf.mxu0
    %v335 = vadd.f32 0.0, %v334
    %v336 = vpop.f32.mrf.mxu0
    %v337 = vadd.f32 0.0, %v336
    %338 = vmatmul.bf16.gmra.mxu0 %v303
    %v339 = vpop.f32.mrf.mxu0
    %v340 = vadd.f32 0.0, %v339
    %v341 = vpop.f32.mrf.mxu0
    %v342 = vadd.f32 0.0, %v341
    %343 = vmatmul.bf16.gmra.mxu0 %v306
    %v344 = vpop.f32.mrf.mxu0
    %v345 = vadd.f32 0.0, %v344
    %v346 = vpop.f32.mrf.mxu0
    %v347 = vadd.f32 0.0, %v346
    %348 = vdwg.mxu0
    %v357 = vunpack.c.l.b16 %v199
    %v358 = vunpack.c.l.b16 %v200
    %v359 = vunpack.c.l.b16 %v201
    %v360 = vunpack.c.l.b16 %v202
    %v361 = vunpack.c.l.b16 %v203
    %v362 = vunpack.c.l.b16 %v204
    %v363 = vunpack.c.l.b16 %v205
    %v364 = vunpack.c.l.b16 %v206
    %v365 = vpack.c.b16 %v358, %v357
    %v366 = vpack.c.b16 %v360, %v359
    %v367 = vpack.c.b16 %v362, %v361
    %v368 = vpack.c.b16 %v364, %v363
    %v377 = vunpack.c.l.b16 %v231
    %v378 = vunpack.c.l.b16 %v232
    %v379 = vunpack.c.l.b16 %v233
    %v380 = vunpack.c.l.b16 %v234
    %v381 = vunpack.c.l.b16 %v235
    %v382 = vunpack.c.l.b16 %v236
    %v383 = vunpack.c.l.b16 %v237
    %v384 = vunpack.c.l.b16 %v238
    %v385 = vpack.c.b16 %v378, %v377
    %v386 = vpack.c.b16 %v380, %v379
    %v387 = vpack.c.b16 %v382, %v381
    %v388 = vpack.c.b16 %v384, %v383
    %v390 = vsel %vm295, %v365, 0
    %v393 = vsel %vm295, %v366, 0
    %v396 = vsel %vm295, %v367, 0
    %v399 = vsel %vm295, %v368, 0
    %v402 = vsel %vm295, %v385, 0
    %v405 = vsel %vm295, %v386, 0
    %v408 = vsel %vm295, %v387, 0
    %v411 = vsel %vm295, %v388, 0
    %413 = vmatpush.bf16.xpose.msra.mxu0 0
    %414 = vmatpush.bf16.xpose.msra.mxu0 0
    %415 = vmatpush.bf16.xpose.msra.mxu0 0
    %416 = vmatpush.bf16.xpose.msra.mxu0 0
    %417 = vmatpush.bf16.xpose.msra.mxu0 %v411
    %418 = vmatpush.bf16.xpose.msra.mxu0 %v408
    %419 = vmatpush.bf16.xpose.msra.mxu0 %v405
    %420 = vmatpush.bf16.xpose.msra.mxu0 %v402
    %421 = vmatmul.bf16.gmra.mxu0 %v390
    %v422 = vpop.f32.mrf.mxu0
    %v423 = vadd.f32 0.0, %v422
    %v424 = vpop.f32.mrf.mxu0
    %v425 = vadd.f32 0.0, %v424
    %426 = vmatmul.bf16.gmra.mxu0 %v393
    %v427 = vpop.f32.mrf.mxu0
    %v428 = vadd.f32 0.0, %v427
    %v429 = vpop.f32.mrf.mxu0
    %v430 = vadd.f32 0.0, %v429
    %431 = vmatmul.bf16.gmra.mxu0 %v396
    %v432 = vpop.f32.mrf.mxu0
    %v433 = vadd.f32 0.0, %v432
    %v434 = vpop.f32.mrf.mxu0
    %v435 = vadd.f32 0.0, %v434
    %436 = vmatmul.bf16.gmra.mxu0 %v399
    %v437 = vpop.f32.mrf.mxu0
    %v438 = vadd.f32 0.0, %v437
    %v439 = vpop.f32.mrf.mxu0
    %v440 = vadd.f32 0.0, %v439
    %441 = vdwg.mxu0
    %v450 = vunpack.c.l.b16 %v207
    %v451 = vunpack.c.l.b16 %v208
    %v452 = vunpack.c.l.b16 %v209
    %v453 = vunpack.c.l.b16 %v210
    %v454 = vunpack.c.l.b16 %v211
    %v455 = vunpack.c.l.b16 %v212
    %v456 = vunpack.c.l.b16 %v213
    %v457 = vunpack.c.l.b16 %v214
    %v458 = vpack.c.b16 %v451, %v450
    %v459 = vpack.c.b16 %v453, %v452
    %v460 = vpack.c.b16 %v455, %v454
    %v461 = vpack.c.b16 %v457, %v456
    %v470 = vunpack.c.l.b16 %v239
    %v471 = vunpack.c.l.b16 %v240
    %v472 = vunpack.c.l.b16 %v241
    %v473 = vunpack.c.l.b16 %v242
    %v474 = vunpack.c.l.b16 %v243
    %v475 = vunpack.c.l.b16 %v244
    %v476 = vunpack.c.l.b16 %v245
    %v477 = vunpack.c.l.b16 %v246
    %v478 = vpack.c.b16 %v471, %v470
    %v479 = vpack.c.b16 %v473, %v472
    %v480 = vpack.c.b16 %v475, %v474
    %v481 = vpack.c.b16 %v477, %v476
    %v483 = vsel %vm295, %v458, 0
    %v486 = vsel %vm295, %v459, 0
    %v489 = vsel %vm295, %v460, 0
    %v492 = vsel %vm295, %v461, 0
    %v495 = vsel %vm295, %v478, 0
    %v498 = vsel %vm295, %v479, 0
    %v501 = vsel %vm295, %v480, 0
    %v504 = vsel %vm295, %v481, 0
    %506 = vmatpush.bf16.xpose.msra.mxu0 0
    %507 = vmatpush.bf16.xpose.msra.mxu0 0
    %508 = vmatpush.bf16.xpose.msra.mxu0 0
    %509 = vmatpush.bf16.xpose.msra.mxu0 0
    %510 = vmatpush.bf16.xpose.msra.mxu0 %v504
    %511 = vmatpush.bf16.xpose.msra.mxu0 %v501
    %512 = vmatpush.bf16.xpose.msra.mxu0 %v498
    %513 = vmatpush.bf16.xpose.msra.mxu0 %v495
    %514 = vmatmul.bf16.gmra.mxu0 %v483
    %v515 = vpop.f32.mrf.mxu0
    %v516 = vadd.f32 0.0, %v515
    %v517 = vpop.f32.mrf.mxu0
    %v518 = vadd.f32 0.0, %v517
    %519 = vmatmul.bf16.gmra.mxu0 %v486
    %v520 = vpop.f32.mrf.mxu0
    %v521 = vadd.f32 0.0, %v520
    %v522 = vpop.f32.mrf.mxu0
    %v523 = vadd.f32 0.0, %v522
    %524 = vmatmul.bf16.gmra.mxu0 %v489
    %v525 = vpop.f32.mrf.mxu0
    %v526 = vadd.f32 0.0, %v525
    %v527 = vpop.f32.mrf.mxu0
    %v528 = vadd.f32 0.0, %v527
    %529 = vmatmul.bf16.gmra.mxu0 %v492
    %v530 = vpop.f32.mrf.mxu0
    %v531 = vadd.f32 0.0, %v530
    %v532 = vpop.f32.mrf.mxu0
    %v533 = vadd.f32 0.0, %v532
    %534 = vdwg.mxu0
    %v543 = vunpack.c.l.b16 %v215
    %v544 = vunpack.c.l.b16 %v216
    %v545 = vunpack.c.l.b16 %v217
    %v546 = vunpack.c.l.b16 %v218
    %v547 = vunpack.c.l.b16 %v219
    %v548 = vunpack.c.l.b16 %v220
    %v549 = vunpack.c.l.b16 %v221
    %v550 = vunpack.c.l.b16 %v222
    %v551 = vpack.c.b16 %v544, %v543
    %v552 = vpack.c.b16 %v546, %v545
    %v553 = vpack.c.b16 %v548, %v547
    %v554 = vpack.c.b16 %v550, %v549
    %v563 = vunpack.c.l.b16 %v247
    %v564 = vunpack.c.l.b16 %v248
    %v565 = vunpack.c.l.b16 %v249
    %v566 = vunpack.c.l.b16 %v250
    %v567 = vunpack.c.l.b16 %v251
    %v568 = vunpack.c.l.b16 %v252
    %v569 = vunpack.c.l.b16 %v253
    %v570 = vunpack.c.l.b16 %v254
    %v571 = vpack.c.b16 %v564, %v563
    %v572 = vpack.c.b16 %v566, %v565
    %v573 = vpack.c.b16 %v568, %v567
    %v574 = vpack.c.b16 %v570, %v569
    %v576 = vsel %vm295, %v551, 0
    %v579 = vsel %vm295, %v552, 0
    %v582 = vsel %vm295, %v553, 0
    %v585 = vsel %vm295, %v554, 0
    %v588 = vsel %vm295, %v571, 0
    %v591 = vsel %vm295, %v572, 0
    %v594 = vsel %vm295, %v573, 0
    %v597 = vsel %vm295, %v574, 0
    %599 = vmatpush.bf16.xpose.msra.mxu0 0
    %600 = vmatpush.bf16.xpose.msra.mxu0 0
    %601 = vmatpush.bf16.xpose.msra.mxu0 0
    %602 = vmatpush.bf16.xpose.msra.mxu0 0
    %603 = vmatpush.bf16.xpose.msra.mxu0 %v597
    %604 = vmatpush.bf16.xpose.msra.mxu0 %v594
    %605 = vmatpush.bf16.xpose.msra.mxu0 %v591
    %606 = vmatpush.bf16.xpose.msra.mxu0 %v588
    %607 = vmatmul.bf16.gmra.mxu0 %v576
    %v608 = vpop.f32.mrf.mxu0
    %v609 = vadd.f32 0.0, %v608
    %v610 = vpop.f32.mrf.mxu0
    %v611 = vadd.f32 0.0, %v610
    %612 = vmatmul.bf16.gmra.mxu0 %v579
    %v613 = vpop.f32.mrf.mxu0
    %v614 = vadd.f32 0.0, %v613
    %v615 = vpop.f32.mrf.mxu0
    %v616 = vadd.f32 0.0, %v615
    %617 = vmatmul.bf16.gmra.mxu0 %v582
    %v618 = vpop.f32.mrf.mxu0
    %v619 = vadd.f32 0.0, %v618
    %v620 = vpop.f32.mrf.mxu0
    %v621 = vadd.f32 0.0, %v620
    %622 = vmatmul.bf16.gmra.mxu0 %v585
    %v623 = vpop.f32.mrf.mxu0
    %v624 = vadd.f32 0.0, %v623
    %v625 = vpop.f32.mrf.mxu0
    %v626 = vadd.f32 0.0, %v625
    %627 = vdwg.mxu0
    %v628 = vsel %vm295, %v330, -inf
    %629 = vmax.xlane.f32.xlu0 %v628
    %v630 = vpop.xlane.xlu0 %629
    %v631 = vsel %vm295, %v332, -inf
    %632 = vmax.xlane.f32.xlu0 %v631
    %v633 = vpop.xlane.xlu0 %632
    %v634 = vsel %vm295, %v335, -inf
    %635 = vmax.xlane.f32.xlu0 %v634
    %v636 = vpop.xlane.xlu0 %635
    %v637 = vsel %vm295, %v337, -inf
    %638 = vmax.xlane.f32.xlu0 %v637
    %v639 = vpop.xlane.xlu0 %638
    %v640 = vsel %vm295, %v340, -inf
    %641 = vmax.xlane.f32.xlu0 %v640
    %v642 = vpop.xlane.xlu0 %641
    %v643 = vsel %vm295, %v342, -inf
    %644 = vmax.xlane.f32.xlu0 %v643
    %v645 = vpop.xlane.xlu0 %644
    %v646 = vsel %vm295, %v345, -inf
    %647 = vmax.xlane.f32.xlu0 %v646
    %v648 = vpop.xlane.xlu0 %647
    %v649 = vsel %vm295, %v347, -inf
    %650 = vmax.xlane.f32.xlu0 %v649
    %v651 = vpop.xlane.xlu0 %650
    %v652 = vsel %vm295, %v423, -inf
    %653 = vmax.xlane.f32.xlu0 %v652
    %v654 = vpop.xlane.xlu0 %653
    %v655 = vsel %vm295, %v425, -inf
    %656 = vmax.xlane.f32.xlu0 %v655
    %v657 = vpop.xlane.xlu0 %656
    %v658 = vsel %vm295, %v428, -inf
    %659 = vmax.xlane.f32.xlu0 %v658
    %v660 = vpop.xlane.xlu0 %659
    %v661 = vsel %vm295, %v430, -inf
    %662 = vmax.xlane.f32.xlu0 %v661
    %v663 = vpop.xlane.xlu0 %662
    %v664 = vsel %vm295, %v433, -inf
    %665 = vmax.xlane.f32.xlu0 %v664
    %v666 = vpop.xlane.xlu0 %665
    %v667 = vsel %vm295, %v435, -inf
    %668 = vmax.xlane.f32.xlu0 %v667
    %v669 = vpop.xlane.xlu0 %668
    %v670 = vsel %vm295, %v438, -inf
    %671 = vmax.xlane.f32.xlu0 %v670
    %v672 = vpop.xlane.xlu0 %671
    %v673 = vsel %vm295, %v440, -inf
    %674 = vmax.xlane.f32.xlu0 %v673
    %v675 = vpop.xlane.xlu0 %674
    %v676 = vsel %vm295, %v516, -inf
    %677 = vmax.xlane.f32.xlu0 %v676
    %v678 = vpop.xlane.xlu0 %677
    %v679 = vsel %vm295, %v518, -inf
    %680 = vmax.xlane.f32.xlu0 %v679
    %v681 = vpop.xlane.xlu0 %680
    %v682 = vsel %vm295, %v521, -inf
    %683 = vmax.xlane.f32.xlu0 %v682
    %v684 = vpop.xlane.xlu0 %683
    %v685 = vsel %vm295, %v523, -inf
    %686 = vmax.xlane.f32.xlu0 %v685
    %v687 = vpop.xlane.xlu0 %686
    %v688 = vsel %vm295, %v526, -inf
    %689 = vmax.xlane.f32.xlu0 %v688
    %v690 = vpop.xlane.xlu0 %689
    %v691 = vsel %vm295, %v528, -inf
    %692 = vmax.xlane.f32.xlu0 %v691
    %v693 = vpop.xlane.xlu0 %692
    %v694 = vsel %vm295, %v531, -inf
    %695 = vmax.xlane.f32.xlu0 %v694
    %v696 = vpop.xlane.xlu0 %695
    %v697 = vsel %vm295, %v533, -inf
    %698 = vmax.xlane.f32.xlu0 %v697
    %v699 = vpop.xlane.xlu0 %698
    %v700 = vsel %vm295, %v609, -inf
    %701 = vmax.xlane.f32.xlu0 %v700
    %v702 = vpop.xlane.xlu0 %701
    %v703 = vsel %vm295, %v611, -inf
    %704 = vmax.xlane.f32.xlu0 %v703
    %v705 = vpop.xlane.xlu0 %704
    %v706 = vsel %vm295, %v614, -inf
    %707 = vmax.xlane.f32.xlu0 %v706
    %v708 = vpop.xlane.xlu0 %707
    %v709 = vsel %vm295, %v616, -inf
    %710 = vmax.xlane.f32.xlu0 %v709
    %v711 = vpop.xlane.xlu0 %710
    %v712 = vsel %vm295, %v619, -inf
    %713 = vmax.xlane.f32.xlu0 %v712
    %v714 = vpop.xlane.xlu0 %713
    %v715 = vsel %vm295, %v621, -inf
    %716 = vmax.xlane.f32.xlu0 %v715
    %v717 = vpop.xlane.xlu0 %716
    %v718 = vsel %vm295, %v624, -inf
    %719 = vmax.xlane.f32.xlu0 %v718
    %v720 = vpop.xlane.xlu0 %719
    %v721 = vsel %vm295, %v626, -inf
    %722 = vmax.xlane.f32.xlu0 %v721
    %v723 = vpop.xlane.xlu0 %722
    %v724 = vsub.f32 %v330, %v630
    %v725 = vsub.f32 %v332, %v633
    %v726 = vsub.f32 %v335, %v636
    %v727 = vsub.f32 %v337, %v639
    %v728 = vsub.f32 %v340, %v642
    %v729 = vsub.f32 %v342, %v645
    %v730 = vsub.f32 %v345, %v648
    %v731 = vsub.f32 %v347, %v651
    %v732 = vsub.f32 %v423, %v654
    %v733 = vsub.f32 %v425, %v657
    %v734 = vsub.f32 %v428, %v660
    %v735 = vsub.f32 %v430, %v663
    %v736 = vsub.f32 %v433, %v666
    %v737 = vsub.f32 %v435, %v669
    %v738 = vsub.f32 %v438, %v672
    %v739 = vsub.f32 %v440, %v675
    %v740 = vsub.f32 %v516, %v678
    %v741 = vsub.f32 %v518, %v681
    %v742 = vsub.f32 %v521, %v684
    %v743 = vsub.f32 %v523, %v687
    %v744 = vsub.f32 %v526, %v690
    %v745 = vsub.f32 %v528, %v693
    %v746 = vsub.f32 %v531, %v696
    %v747 = vsub.f32 %v533, %v699
    %v748 = vsub.f32 %v609, %v702
    %v749 = vsub.f32 %v611, %v705
    %v750 = vsub.f32 %v614, %v708
    %v751 = vsub.f32 %v616, %v711
    %v752 = vsub.f32 %v619, %v714
    %v753 = vsub.f32 %v621, %v717
    %v754 = vsub.f32 %v624, %v720
    %v755 = vsub.f32 %v626, %v723
    %v756 = vmul.f32 %v724, 1.442695
    %v757 = vpow.pop %v756
    %v758 = vmul.f32 %v725, 1.442695
    %v759 = vpow.pop %v758
    %v760 = vmul.f32 %v726, 1.442695
    %v761 = vpow.pop %v760
    %v762 = vmul.f32 %v727, 1.442695
    %v763 = vpow.pop %v762
    %v764 = vmul.f32 %v728, 1.442695
    %v765 = vpow.pop %v764
    %v766 = vmul.f32 %v729, 1.442695
    %v767 = vpow.pop %v766
    %v768 = vmul.f32 %v730, 1.442695
    %v769 = vpow.pop %v768
    %v770 = vmul.f32 %v731, 1.442695
    %v771 = vpow.pop %v770
    %v772 = vmul.f32 %v732, 1.442695
    %v773 = vpow.pop %v772
    %v774 = vmul.f32 %v733, 1.442695
    %v775 = vpow.pop %v774
    %v776 = vmul.f32 %v734, 1.442695
    %v777 = vpow.pop %v776
    %v778 = vmul.f32 %v735, 1.442695
    %v779 = vpow.pop %v778
    %v780 = vmul.f32 %v736, 1.442695
    %v781 = vpow.pop %v780
    %v782 = vmul.f32 %v737, 1.442695
    %v783 = vpow.pop %v782
    %v784 = vmul.f32 %v738, 1.442695
    %v785 = vpow.pop %v784
    %v786 = vmul.f32 %v739, 1.442695
    %v787 = vpow.pop %v786
    %v788 = vmul.f32 %v740, 1.442695
    %v789 = vpow.pop %v788
    %v790 = vmul.f32 %v741, 1.442695
    %v791 = vpow.pop %v790
    %v792 = vmul.f32 %v742, 1.442695
    %v793 = vpow.pop %v792
    %v794 = vmul.f32 %v743, 1.442695
    %v795 = vpow.pop %v794
    %v796 = vmul.f32 %v744, 1.442695
    %v797 = vpow.pop %v796
    %v798 = vmul.f32 %v745, 1.442695
    %v799 = vpow.pop %v798
    %v800 = vmul.f32 %v746, 1.442695
    %v801 = vpow.pop %v800
    %v802 = vmul.f32 %v747, 1.442695
    %v803 = vpow.pop %v802
    %v804 = vmul.f32 %v748, 1.442695
    %v805 = vpow.pop %v804
    %v806 = vmul.f32 %v749, 1.442695
    %v807 = vpow.pop %v806
    %v808 = vmul.f32 %v750, 1.442695
    %v809 = vpow.pop %v808
    %v810 = vmul.f32 %v751, 1.442695
    %v811 = vpow.pop %v810
    %v812 = vmul.f32 %v752, 1.442695
    %v813 = vpow.pop %v812
    %v814 = vmul.f32 %v753, 1.442695
    %v815 = vpow.pop %v814
    %v816 = vmul.f32 %v754, 1.442695
    %v817 = vpow.pop %v816
    %v818 = vmul.f32 %v755, 1.442695
    %v819 = vpow.pop %v818
    %v820 = vsel %vm295, %v757, 0.0
    %821 = vadd.xlane.f32.xlu0 %v820
    %v822 = vpop.xlane.xlu0 %821
    %v823 = vsel %vm295, %v759, 0.0
    %824 = vadd.xlane.f32.xlu0 %v823
    %v825 = vpop.xlane.xlu0 %824
    %v826 = vsel %vm295, %v761, 0.0
    %827 = vadd.xlane.f32.xlu0 %v826
    %v828 = vpop.xlane.xlu0 %827
    %v829 = vsel %vm295, %v763, 0.0
    %830 = vadd.xlane.f32.xlu0 %v829
    %v831 = vpop.xlane.xlu0 %830
    %v832 = vsel %vm295, %v765, 0.0
    %833 = vadd.xlane.f32.xlu0 %v832
    %v834 = vpop.xlane.xlu0 %833
    %v835 = vsel %vm295, %v767, 0.0
    %836 = vadd.xlane.f32.xlu0 %v835
    %v837 = vpop.xlane.xlu0 %836
    %v838 = vsel %vm295, %v769, 0.0
    %839 = vadd.xlane.f32.xlu0 %v838
    %v840 = vpop.xlane.xlu0 %839
    %v841 = vsel %vm295, %v771, 0.0
    %842 = vadd.xlane.f32.xlu0 %v841
    %v843 = vpop.xlane.xlu0 %842
    %v844 = vsel %vm295, %v773, 0.0
    %845 = vadd.xlane.f32.xlu0 %v844
    %v846 = vpop.xlane.xlu0 %845
    %v847 = vsel %vm295, %v775, 0.0
    %848 = vadd.xlane.f32.xlu0 %v847
    %v849 = vpop.xlane.xlu0 %848
    %v850 = vsel %vm295, %v777, 0.0
    %851 = vadd.xlane.f32.xlu0 %v850
    %v852 = vpop.xlane.xlu0 %851
    %v853 = vsel %vm295, %v779, 0.0
    %854 = vadd.xlane.f32.xlu0 %v853
    %v855 = vpop.xlane.xlu0 %854
    %v856 = vsel %vm295, %v781, 0.0
    %857 = vadd.xlane.f32.xlu0 %v856
    %v858 = vpop.xlane.xlu0 %857
    %v859 = vsel %vm295, %v783, 0.0
    %860 = vadd.xlane.f32.xlu0 %v859
    %v861 = vpop.xlane.xlu0 %860
    %v862 = vsel %vm295, %v785, 0.0
    %863 = vadd.xlane.f32.xlu0 %v862
    %v864 = vpop.xlane.xlu0 %863
    %v865 = vsel %vm295, %v787, 0.0
    %866 = vadd.xlane.f32.xlu0 %v865
    %v867 = vpop.xlane.xlu0 %866
    %v868 = vsel %vm295, %v789, 0.0
    %869 = vadd.xlane.f32.xlu0 %v868
    %v870 = vpop.xlane.xlu0 %869
    %v871 = vsel %vm295, %v791, 0.0
    %872 = vadd.xlane.f32.xlu0 %v871
    %v873 = vpop.xlane.xlu0 %872
    %v874 = vsel %vm295, %v793, 0.0
    %875 = vadd.xlane.f32.xlu0 %v874
    %v876 = vpop.xlane.xlu0 %875
    %v877 = vsel %vm295, %v795, 0.0
    %878 = vadd.xlane.f32.xlu0 %v877
    %v879 = vpop.xlane.xlu0 %878
    %v880 = vsel %vm295, %v797, 0.0
    %881 = vadd.xlane.f32.xlu0 %v880
    %v882 = vpop.xlane.xlu0 %881
    %v883 = vsel %vm295, %v799, 0.0
    %884 = vadd.xlane.f32.xlu0 %v883
    %v885 = vpop.xlane.xlu0 %884
    %v886 = vsel %vm295, %v801, 0.0
    %887 = vadd.xlane.f32.xlu0 %v886
    %v888 = vpop.xlane.xlu0 %887
    %v889 = vsel %vm295, %v803, 0.0
    %890 = vadd.xlane.f32.xlu0 %v889
    %v891 = vpop.xlane.xlu0 %890
    %v892 = vsel %vm295, %v805, 0.0
    %893 = vadd.xlane.f32.xlu0 %v892
    %v894 = vpop.xlane.xlu0 %893
    %v895 = vsel %vm295, %v807, 0.0
    %896 = vadd.xlane.f32.xlu0 %v895
    %v897 = vpop.xlane.xlu0 %896
    %v898 = vsel %vm295, %v809, 0.0
    %899 = vadd.xlane.f32.xlu0 %v898
    %v900 = vpop.xlane.xlu0 %899
    %v901 = vsel %vm295, %v811, 0.0
    %902 = vadd.xlane.f32.xlu0 %v901
    %v903 = vpop.xlane.xlu0 %902
    %v904 = vsel %vm295, %v813, 0.0
    %905 = vadd.xlane.f32.xlu0 %v904
    %v906 = vpop.xlane.xlu0 %905
    %v907 = vsel %vm295, %v815, 0.0
    %908 = vadd.xlane.f32.xlu0 %v907
    %v909 = vpop.xlane.xlu0 %908
    %v910 = vsel %vm295, %v817, 0.0
    %911 = vadd.xlane.f32.xlu0 %v910
    %v912 = vpop.xlane.xlu0 %911
    %v913 = vsel %vm295, %v819, 0.0
    %914 = vadd.xlane.f32.xlu0 %v913
    %v915 = vpop.xlane.xlu0 %914
    %v916 = vrcp.pop %v822
    %v917 = vrcp.pop %v825
    %v918 = vrcp.pop %v828
    %v919 = vrcp.pop %v831
    %v920 = vrcp.pop %v834
    %v921 = vrcp.pop %v837
    %v922 = vrcp.pop %v840
    %v923 = vrcp.pop %v843
    %v924 = vrcp.pop %v846
    %v925 = vrcp.pop %v849
    %v926 = vrcp.pop %v852
    %v927 = vrcp.pop %v855
    %v928 = vrcp.pop %v858
    %v929 = vrcp.pop %v861
    %v930 = vrcp.pop %v864
    %v931 = vrcp.pop %v867
    %v932 = vrcp.pop %v870
    %v933 = vrcp.pop %v873
    %v934 = vrcp.pop %v876
    %v935 = vrcp.pop %v879
    %v936 = vrcp.pop %v882
    %v937 = vrcp.pop %v885
    %v938 = vrcp.pop %v888
    %v939 = vrcp.pop %v891
    %v940 = vrcp.pop %v894
    %v941 = vrcp.pop %v897
    %v942 = vrcp.pop %v900
    %v943 = vrcp.pop %v903
    %v944 = vrcp.pop %v906
    %v945 = vrcp.pop %v909
    %v946 = vrcp.pop %v912
    %v947 = vrcp.pop %v915
    %v948 = vmul.f32 %v916, 10.0
    %v949 = vmul.f32 %v917, 10.0
    %v950 = vmul.f32 %v918, 10.0
    %v951 = vmul.f32 %v919, 10.0
    %v952 = vmul.f32 %v920, 10.0
    %v953 = vmul.f32 %v921, 10.0
    %v954 = vmul.f32 %v922, 10.0
    %v955 = vmul.f32 %v923, 10.0
    %v956 = vmul.f32 %v924, 10.0
    %v957 = vmul.f32 %v925, 10.0
    %v958 = vmul.f32 %v926, 10.0
    %v959 = vmul.f32 %v927, 10.0
    %v960 = vmul.f32 %v928, 10.0
    %v961 = vmul.f32 %v929, 10.0
    %v962 = vmul.f32 %v930, 10.0
    %v963 = vmul.f32 %v931, 10.0
    %v964 = vmul.f32 %v932, 10.0
    %v965 = vmul.f32 %v933, 10.0
    %v966 = vmul.f32 %v934, 10.0
    %v967 = vmul.f32 %v935, 10.0
    %v968 = vmul.f32 %v936, 10.0
    %v969 = vmul.f32 %v937, 10.0
    %v970 = vmul.f32 %v938, 10.0
    %v971 = vmul.f32 %v939, 10.0
    %v972 = vmul.f32 %v940, 10.0
    %v973 = vmul.f32 %v941, 10.0
    %v974 = vmul.f32 %v942, 10.0
    %v975 = vmul.f32 %v943, 10.0
    %v976 = vmul.f32 %v944, 10.0
    %v977 = vmul.f32 %v945, 10.0
    %v978 = vmul.f32 %v946, 10.0
    %v979 = vmul.f32 %v947, 10.0
    %v980 = vlaneseq
    %v981 = vshrl.u32 %v980, 7
    %v982 = vadd.s32 %v981, 8
    %v983 = vadd.s32 %v981, 16
    %v984 = vadd.s32 %v981, 24
    %v985 = vadd.s32 %v981, 32
    %v986 = vadd.s32 %v981, 40
    %v987 = vadd.s32 %v981, 48
    %v988 = vadd.s32 %v981, 56
    %v989 = vlaneseq
    %v990 = vand.u32 %v989, 127
    %v991 = vadd.s32 %v981, 64
    %v992 = vadd.s32 %v982, 64
    %v993 = vadd.s32 %v983, 64
    %v994 = vadd.s32 %v984, 64
    %v995 = vadd.s32 %v985, 64
    %v996 = vadd.s32 %v986, 64
    %v997 = vadd.s32 %v987, 64
    %v998 = vadd.s32 %v988, 64
    %v999 = vadd.s32 %v981, 128
    %v1000 = vadd.s32 %v982, 128
    %v1001 = vadd.s32 %v983, 128
    %v1002 = vadd.s32 %v984, 128
    %v1003 = vadd.s32 %v985, 128
    %v1004 = vadd.s32 %v986, 128
    %v1005 = vadd.s32 %v987, 128
    %v1006 = vadd.s32 %v988, 128
    %v1007 = vadd.s32 %v981, 192
    %v1008 = vadd.s32 %v982, 192
    %v1009 = vadd.s32 %v983, 192
    %v1010 = vadd.s32 %v984, 192
    %v1011 = vadd.s32 %v985, 192
    %v1012 = vadd.s32 %v986, 192
    %v1013 = vadd.s32 %v987, 192
    %v1014 = vadd.s32 %v988, 192
    %v1015 = vmul.u32 %v981, 64
    %v1016 = vmul.u32 %v982, 64
    %v1017 = vmul.u32 %v983, 64
    %v1018 = vmul.u32 %v984, 64
    %v1019 = vmul.u32 %v985, 64
    %v1020 = vmul.u32 %v986, 64
    %v1021 = vmul.u32 %v987, 64
    %v1022 = vmul.u32 %v988, 64
    %v1023 = vmul.u32 %v991, 64
    %v1024 = vmul.u32 %v992, 64
    %v1025 = vmul.u32 %v993, 64
    %v1026 = vmul.u32 %v994, 64
    %v1027 = vmul.u32 %v995, 64
    %v1028 = vmul.u32 %v996, 64
    %v1029 = vmul.u32 %v997, 64
    %v1030 = vmul.u32 %v998, 64
    %v1031 = vmul.u32 %v999, 64
    %v1032 = vmul.u32 %v1000, 64
    %v1033 = vmul.u32 %v1001, 64
    %v1034 = vmul.u32 %v1002, 64
    %v1035 = vmul.u32 %v1003, 64
    %v1036 = vmul.u32 %v1004, 64
    %v1037 = vmul.u32 %v1005, 64
    %v1038 = vmul.u32 %v1006, 64
    %v1039 = vmul.u32 %v1007, 64
    %v1040 = vmul.u32 %v1008, 64
    %v1041 = vmul.u32 %v1009, 64
    %v1042 = vmul.u32 %v1010, 64
    %v1043 = vmul.u32 %v1011, 64
    %v1044 = vmul.u32 %v1012, 64
    %v1045 = vmul.u32 %v1013, 64
    %v1046 = vmul.u32 %v1014, 64
    %v1047 = vadd.s32 %v1015, %v990
    %v1048 = vadd.s32 %v1016, %v990
    %v1049 = vadd.s32 %v1017, %v990
    %v1050 = vadd.s32 %v1018, %v990
    %v1051 = vadd.s32 %v1019, %v990
    %v1052 = vadd.s32 %v1020, %v990
    %v1053 = vadd.s32 %v1021, %v990
    %v1054 = vadd.s32 %v1022, %v990
    %v1055 = vadd.s32 %v1023, %v990
    %v1056 = vadd.s32 %v1024, %v990
    %v1057 = vadd.s32 %v1025, %v990
    %v1058 = vadd.s32 %v1026, %v990
    %v1059 = vadd.s32 %v1027, %v990
    %v1060 = vadd.s32 %v1028, %v990
    %v1061 = vadd.s32 %v1029, %v990
    %v1062 = vadd.s32 %v1030, %v990
    %v1063 = vadd.s32 %v1031, %v990
    %v1064 = vadd.s32 %v1032, %v990
    %v1065 = vadd.s32 %v1033, %v990
    %v1066 = vadd.s32 %v1034, %v990
    %v1067 = vadd.s32 %v1035, %v990
    %v1068 = vadd.s32 %v1036, %v990
    %v1069 = vadd.s32 %v1037, %v990
    %v1070 = vadd.s32 %v1038, %v990
    %v1071 = vadd.s32 %v1039, %v990
    %v1072 = vadd.s32 %v1040, %v990
    %v1073 = vadd.s32 %v1041, %v990
    %v1074 = vadd.s32 %v1042, %v990
    %v1075 = vadd.s32 %v1043, %v990
    %v1076 = vadd.s32 %v1044, %v990
    %v1077 = vadd.s32 %v1045, %v990
    %v1078 = vadd.s32 %v1046, %v990
    %v1079 = vmul.u32 %v1047, 2654435761
    %v1080 = vmul.u32 %v1048, 2654435761
    %v1081 = vmul.u32 %v1049, 2654435761
    %v1082 = vmul.u32 %v1050, 2654435761
    %v1083 = vmul.u32 %v1051, 2654435761
    %v1084 = vmul.u32 %v1052, 2654435761
    %v1085 = vmul.u32 %v1053, 2654435761
    %v1086 = vmul.u32 %v1054, 2654435761
    %v1087 = vmul.u32 %v1055, 2654435761
    %v1088 = vmul.u32 %v1056, 2654435761
    %v1089 = vmul.u32 %v1057, 2654435761
    %v1090 = vmul.u32 %v1058, 2654435761
    %v1091 = vmul.u32 %v1059, 2654435761
    %v1092 = vmul.u32 %v1060, 2654435761
    %v1093 = vmul.u32 %v1061, 2654435761
    %v1094 = vmul.u32 %v1062, 2654435761
    %v1095 = vmul.u32 %v1063, 2654435761
    %v1096 = vmul.u32 %v1064, 2654435761
    %v1097 = vmul.u32 %v1065, 2654435761
    %v1098 = vmul.u32 %v1066, 2654435761
    %v1099 = vmul.u32 %v1067, 2654435761
    %v1100 = vmul.u32 %v1068, 2654435761
    %v1101 = vmul.u32 %v1069, 2654435761
    %v1102 = vmul.u32 %v1070, 2654435761
    %v1103 = vmul.u32 %v1071, 2654435761
    %v1104 = vmul.u32 %v1072, 2654435761
    %v1105 = vmul.u32 %v1073, 2654435761
    %v1106 = vmul.u32 %v1074, 2654435761
    %v1107 = vmul.u32 %v1075, 2654435761
    %v1108 = vmul.u32 %v1076, 2654435761
    %v1109 = vmul.u32 %v1077, 2654435761
    %v1110 = vmul.u32 %v1078, 2654435761
    %v1111 = vshra.s32 %v1079, 16
    %v1112 = vshra.s32 %v1080, 16
    %v1113 = vshra.s32 %v1081, 16
    %v1114 = vshra.s32 %v1082, 16
    %v1115 = vshra.s32 %v1083, 16
    %v1116 = vshra.s32 %v1084, 16
    %v1117 = vshra.s32 %v1085, 16
    %v1118 = vshra.s32 %v1086, 16
    %v1119 = vshra.s32 %v1087, 16
    %v1120 = vshra.s32 %v1088, 16
    %v1121 = vshra.s32 %v1089, 16
    %v1122 = vshra.s32 %v1090, 16
    %v1123 = vshra.s32 %v1091, 16
    %v1124 = vshra.s32 %v1092, 16
    %v1125 = vshra.s32 %v1093, 16
    %v1126 = vshra.s32 %v1094, 16
    %v1127 = vshra.s32 %v1095, 16
    %v1128 = vshra.s32 %v1096, 16
    %v1129 = vshra.s32 %v1097, 16
    %v1130 = vshra.s32 %v1098, 16
    %v1131 = vshra.s32 %v1099, 16
    %v1132 = vshra.s32 %v1100, 16
    %v1133 = vshra.s32 %v1101, 16
    %v1134 = vshra.s32 %v1102, 16
    %v1135 = vshra.s32 %v1103, 16
    %v1136 = vshra.s32 %v1104, 16
    %v1137 = vshra.s32 %v1105, 16
    %v1138 = vshra.s32 %v1106, 16
    %v1139 = vshra.s32 %v1107, 16
    %v1140 = vshra.s32 %v1108, 16
    %v1141 = vshra.s32 %v1109, 16
    %v1142 = vshra.s32 %v1110, 16
    %v1143 = vand.u32 %v1111, 65535
    %v1144 = vand.u32 %v1112, 65535
    %v1145 = vand.u32 %v1113, 65535
    %v1146 = vand.u32 %v1114, 65535
    %v1147 = vand.u32 %v1115, 65535
    %v1148 = vand.u32 %v1116, 65535
    %v1149 = vand.u32 %v1117, 65535
    %v1150 = vand.u32 %v1118, 65535
    %v1151 = vand.u32 %v1119, 65535
    %v1152 = vand.u32 %v1120, 65535
    %v1153 = vand.u32 %v1121, 65535
    %v1154 = vand.u32 %v1122, 65535
    %v1155 = vand.u32 %v1123, 65535
    %v1156 = vand.u32 %v1124, 65535
    %v1157 = vand.u32 %v1125, 65535
    %v1158 = vand.u32 %v1126, 65535
    %v1159 = vand.u32 %v1127, 65535
    %v1160 = vand.u32 %v1128, 65535
    %v1161 = vand.u32 %v1129, 65535
    %v1162 = vand.u32 %v1130, 65535
    %v1163 = vand.u32 %v1131, 65535
    %v1164 = vand.u32 %v1132, 65535
    %v1165 = vand.u32 %v1133, 65535
    %v1166 = vand.u32 %v1134, 65535
    %v1167 = vand.u32 %v1135, 65535
    %v1168 = vand.u32 %v1136, 65535
    %v1169 = vand.u32 %v1137, 65535
    %v1170 = vand.u32 %v1138, 65535
    %v1171 = vand.u32 %v1139, 65535
    %v1172 = vand.u32 %v1140, 65535
    %v1173 = vand.u32 %v1141, 65535
    %v1174 = vand.u32 %v1142, 65535
    %v1175 = vxor.u32 %v1079, %v1143
    %v1176 = vxor.u32 %v1080, %v1144
    %v1177 = vxor.u32 %v1081, %v1145
    %v1178 = vxor.u32 %v1082, %v1146
    %v1179 = vxor.u32 %v1083, %v1147
    %v1180 = vxor.u32 %v1084, %v1148
    %v1181 = vxor.u32 %v1085, %v1149
    %v1182 = vxor.u32 %v1086, %v1150
    %v1183 = vxor.u32 %v1087, %v1151
    %v1184 = vxor.u32 %v1088, %v1152
    %v1185 = vxor.u32 %v1089, %v1153
    %v1186 = vxor.u32 %v1090, %v1154
    %v1187 = vxor.u32 %v1091, %v1155
    %v1188 = vxor.u32 %v1092, %v1156
    %v1189 = vxor.u32 %v1093, %v1157
    %v1190 = vxor.u32 %v1094, %v1158
    %v1191 = vxor.u32 %v1095, %v1159
    %v1192 = vxor.u32 %v1096, %v1160
    %v1193 = vxor.u32 %v1097, %v1161
    %v1194 = vxor.u32 %v1098, %v1162
    %v1195 = vxor.u32 %v1099, %v1163
    %v1196 = vxor.u32 %v1100, %v1164
    %v1197 = vxor.u32 %v1101, %v1165
    %v1198 = vxor.u32 %v1102, %v1166
    %v1199 = vxor.u32 %v1103, %v1167
    %v1200 = vxor.u32 %v1104, %v1168
    %v1201 = vxor.u32 %v1105, %v1169
    %v1202 = vxor.u32 %v1106, %v1170
    %v1203 = vxor.u32 %v1107, %v1171
    %v1204 = vxor.u32 %v1108, %v1172
    %v1205 = vxor.u32 %v1109, %v1173
    %v1206 = vxor.u32 %v1110, %v1174
    %v1207 = vmul.u32 %v1175, 2246822507
    %v1208 = vmul.u32 %v1176, 2246822507
    %v1209 = vmul.u32 %v1177, 2246822507
    %v1210 = vmul.u32 %v1178, 2246822507
    %v1211 = vmul.u32 %v1179, 2246822507
    %v1212 = vmul.u32 %v1180, 2246822507
    %v1213 = vmul.u32 %v1181, 2246822507
    %v1214 = vmul.u32 %v1182, 2246822507
    %v1215 = vmul.u32 %v1183, 2246822507
    %v1216 = vmul.u32 %v1184, 2246822507
    %v1217 = vmul.u32 %v1185, 2246822507
    %v1218 = vmul.u32 %v1186, 2246822507
    %v1219 = vmul.u32 %v1187, 2246822507
    %v1220 = vmul.u32 %v1188, 2246822507
    %v1221 = vmul.u32 %v1189, 2246822507
    %v1222 = vmul.u32 %v1190, 2246822507
    %v1223 = vmul.u32 %v1191, 2246822507
    %v1224 = vmul.u32 %v1192, 2246822507
    %v1225 = vmul.u32 %v1193, 2246822507
    %v1226 = vmul.u32 %v1194, 2246822507
    %v1227 = vmul.u32 %v1195, 2246822507
    %v1228 = vmul.u32 %v1196, 2246822507
    %v1229 = vmul.u32 %v1197, 2246822507
    %v1230 = vmul.u32 %v1198, 2246822507
    %v1231 = vmul.u32 %v1199, 2246822507
    %v1232 = vmul.u32 %v1200, 2246822507
    %v1233 = vmul.u32 %v1201, 2246822507
    %v1234 = vmul.u32 %v1202, 2246822507
    %v1235 = vmul.u32 %v1203, 2246822507
    %v1236 = vmul.u32 %v1204, 2246822507
    %v1237 = vmul.u32 %v1205, 2246822507
    %v1238 = vmul.u32 %v1206, 2246822507
    %v1239 = vshra.s32 %v1207, 13
    %v1240 = vshra.s32 %v1208, 13
    %v1241 = vshra.s32 %v1209, 13
    %v1242 = vshra.s32 %v1210, 13
    %v1243 = vshra.s32 %v1211, 13
    %v1244 = vshra.s32 %v1212, 13
    %v1245 = vshra.s32 %v1213, 13
    %v1246 = vshra.s32 %v1214, 13
    %v1247 = vshra.s32 %v1215, 13
    %v1248 = vshra.s32 %v1216, 13
    %v1249 = vshra.s32 %v1217, 13
    %v1250 = vshra.s32 %v1218, 13
    %v1251 = vshra.s32 %v1219, 13
    %v1252 = vshra.s32 %v1220, 13
    %v1253 = vshra.s32 %v1221, 13
    %v1254 = vshra.s32 %v1222, 13
    %v1255 = vshra.s32 %v1223, 13
    %v1256 = vshra.s32 %v1224, 13
    %v1257 = vshra.s32 %v1225, 13
    %v1258 = vshra.s32 %v1226, 13
    %v1259 = vshra.s32 %v1227, 13
    %v1260 = vshra.s32 %v1228, 13
    %v1261 = vshra.s32 %v1229, 13
    %v1262 = vshra.s32 %v1230, 13
    %v1263 = vshra.s32 %v1231, 13
    %v1264 = vshra.s32 %v1232, 13
    %v1265 = vshra.s32 %v1233, 13
    %v1266 = vshra.s32 %v1234, 13
    %v1267 = vshra.s32 %v1235, 13
    %v1268 = vshra.s32 %v1236, 13
    %v1269 = vshra.s32 %v1237, 13
    %v1270 = vshra.s32 %v1238, 13
    %v1271 = vand.u32 %v1239, 524287
    %v1272 = vand.u32 %v1240, 524287
    %v1273 = vand.u32 %v1241, 524287
    %v1274 = vand.u32 %v1242, 524287
    %v1275 = vand.u32 %v1243, 524287
    %v1276 = vand.u32 %v1244, 524287
    %v1277 = vand.u32 %v1245, 524287
    %v1278 = vand.u32 %v1246, 524287
    %v1279 = vand.u32 %v1247, 524287
    %v1280 = vand.u32 %v1248, 524287
    %v1281 = vand.u32 %v1249, 524287
    %v1282 = vand.u32 %v1250, 524287
    %v1283 = vand.u32 %v1251, 524287
    %v1284 = vand.u32 %v1252, 524287
    %v1285 = vand.u32 %v1253, 524287
    %v1286 = vand.u32 %v1254, 524287
    %v1287 = vand.u32 %v1255, 524287
    %v1288 = vand.u32 %v1256, 524287
    %v1289 = vand.u32 %v1257, 524287
    %v1290 = vand.u32 %v1258, 524287
    %v1291 = vand.u32 %v1259, 524287
    %v1292 = vand.u32 %v1260, 524287
    %v1293 = vand.u32 %v1261, 524287
    %v1294 = vand.u32 %v1262, 524287
    %v1295 = vand.u32 %v1263, 524287
    %v1296 = vand.u32 %v1264, 524287
    %v1297 = vand.u32 %v1265, 524287
    %v1298 = vand.u32 %v1266, 524287
    %v1299 = vand.u32 %v1267, 524287
    %v1300 = vand.u32 %v1268, 524287
    %v1301 = vand.u32 %v1269, 524287
    %v1302 = vand.u32 %v1270, 524287
    %v1303 = vxor.u32 %v1207, %v1271
    %v1304 = vxor.u32 %v1208, %v1272
    %v1305 = vxor.u32 %v1209, %v1273
    %v1306 = vxor.u32 %v1210, %v1274
    %v1307 = vxor.u32 %v1211, %v1275
    %v1308 = vxor.u32 %v1212, %v1276
    %v1309 = vxor.u32 %v1213, %v1277
    %v1310 = vxor.u32 %v1214, %v1278
    %v1311 = vxor.u32 %v1215, %v1279
    %v1312 = vxor.u32 %v1216, %v1280
    %v1313 = vxor.u32 %v1217, %v1281
    %v1314 = vxor.u32 %v1218, %v1282
    %v1315 = vxor.u32 %v1219, %v1283
    %v1316 = vxor.u32 %v1220, %v1284
    %v1317 = vxor.u32 %v1221, %v1285
    %v1318 = vxor.u32 %v1222, %v1286
    %v1319 = vxor.u32 %v1223, %v1287
    %v1320 = vxor.u32 %v1224, %v1288
    %v1321 = vxor.u32 %v1225, %v1289
    %v1322 = vxor.u32 %v1226, %v1290
    %v1323 = vxor.u32 %v1227, %v1291
    %v1324 = vxor.u32 %v1228, %v1292
    %v1325 = vxor.u32 %v1229, %v1293
    %v1326 = vxor.u32 %v1230, %v1294
    %v1327 = vxor.u32 %v1231, %v1295
    %v1328 = vxor.u32 %v1232, %v1296
    %v1329 = vxor.u32 %v1233, %v1297
    %v1330 = vxor.u32 %v1234, %v1298
    %v1331 = vxor.u32 %v1235, %v1299
    %v1332 = vxor.u32 %v1236, %v1300
    %v1333 = vxor.u32 %v1237, %v1301
    %v1334 = vxor.u32 %v1238, %v1302
    %v1335 = vmul.u32 %v1303, 3266489909
    %v1336 = vmul.u32 %v1304, 3266489909
    %v1337 = vmul.u32 %v1305, 3266489909
    %v1338 = vmul.u32 %v1306, 3266489909
    %v1339 = vmul.u32 %v1307, 3266489909
    %v1340 = vmul.u32 %v1308, 3266489909
    %v1341 = vmul.u32 %v1309, 3266489909
    %v1342 = vmul.u32 %v1310, 3266489909
    %v1343 = vmul.u32 %v1311, 3266489909
    %v1344 = vmul.u32 %v1312, 3266489909
    %v1345 = vmul.u32 %v1313, 3266489909
    %v1346 = vmul.u32 %v1314, 3266489909
    %v1347 = vmul.u32 %v1315, 3266489909
    %v1348 = vmul.u32 %v1316, 3266489909
    %v1349 = vmul.u32 %v1317, 3266489909
    %v1350 = vmul.u32 %v1318, 3266489909
    %v1351 = vmul.u32 %v1319, 3266489909
    %v1352 = vmul.u32 %v1320, 3266489909
    %v1353 = vmul.u32 %v1321, 3266489909
    %v1354 = vmul.u32 %v1322, 3266489909
    %v1355 = vmul.u32 %v1323, 3266489909
    %v1356 = vmul.u32 %v1324, 3266489909
    %v1357 = vmul.u32 %v1325, 3266489909
    %v1358 = vmul.u32 %v1326, 3266489909
    %v1359 = vmul.u32 %v1327, 3266489909
    %v1360 = vmul.u32 %v1328, 3266489909
    %v1361 = vmul.u32 %v1329, 3266489909
    %v1362 = vmul.u32 %v1330, 3266489909
    %v1363 = vmul.u32 %v1331, 3266489909
    %v1364 = vmul.u32 %v1332, 3266489909
    %v1365 = vmul.u32 %v1333, 3266489909
    %v1366 = vmul.u32 %v1334, 3266489909
    %v1367 = vshra.s32 %v1335, 16
    %v1368 = vshra.s32 %v1336, 16
    %v1369 = vshra.s32 %v1337, 16
    %v1370 = vshra.s32 %v1338, 16
    %v1371 = vshra.s32 %v1339, 16
    %v1372 = vshra.s32 %v1340, 16
    %v1373 = vshra.s32 %v1341, 16
    %v1374 = vshra.s32 %v1342, 16
    %v1375 = vshra.s32 %v1343, 16
    %v1376 = vshra.s32 %v1344, 16
    %v1377 = vshra.s32 %v1345, 16
    %v1378 = vshra.s32 %v1346, 16
    %v1379 = vshra.s32 %v1347, 16
    %v1380 = vshra.s32 %v1348, 16
    %v1381 = vshra.s32 %v1349, 16
    %v1382 = vshra.s32 %v1350, 16
    %v1383 = vshra.s32 %v1351, 16
    %v1384 = vshra.s32 %v1352, 16
    %v1385 = vshra.s32 %v1353, 16
    %v1386 = vshra.s32 %v1354, 16
    %v1387 = vshra.s32 %v1355, 16
    %v1388 = vshra.s32 %v1356, 16
    %v1389 = vshra.s32 %v1357, 16
    %v1390 = vshra.s32 %v1358, 16
    %v1391 = vshra.s32 %v1359, 16
    %v1392 = vshra.s32 %v1360, 16
    %v1393 = vshra.s32 %v1361, 16
    %v1394 = vshra.s32 %v1362, 16
    %v1395 = vshra.s32 %v1363, 16
    %v1396 = vshra.s32 %v1364, 16
    %v1397 = vshra.s32 %v1365, 16
    %v1398 = vshra.s32 %v1366, 16
    %v1399 = vand.u32 %v1367, 65535
    %v1400 = vand.u32 %v1368, 65535
    %v1401 = vand.u32 %v1369, 65535
    %v1402 = vand.u32 %v1370, 65535
    %v1403 = vand.u32 %v1371, 65535
    %v1404 = vand.u32 %v1372, 65535
    %v1405 = vand.u32 %v1373, 65535
    %v1406 = vand.u32 %v1374, 65535
    %v1407 = vand.u32 %v1375, 65535
    %v1408 = vand.u32 %v1376, 65535
    %v1409 = vand.u32 %v1377, 65535
    %v1410 = vand.u32 %v1378, 65535
    %v1411 = vand.u32 %v1379, 65535
    %v1412 = vand.u32 %v1380, 65535
    %v1413 = vand.u32 %v1381, 65535
    %v1414 = vand.u32 %v1382, 65535
    %v1415 = vand.u32 %v1383, 65535
    %v1416 = vand.u32 %v1384, 65535
    %v1417 = vand.u32 %v1385, 65535
    %v1418 = vand.u32 %v1386, 65535
    %v1419 = vand.u32 %v1387, 65535
    %v1420 = vand.u32 %v1388, 65535
    %v1421 = vand.u32 %v1389, 65535
    %v1422 = vand.u32 %v1390, 65535
    %v1423 = vand.u32 %v1391, 65535
    %v1424 = vand.u32 %v1392, 65535
    %v1425 = vand.u32 %v1393, 65535
    %v1426 = vand.u32 %v1394, 65535
    %v1427 = vand.u32 %v1395, 65535
    %v1428 = vand.u32 %v1396, 65535
    %v1429 = vand.u32 %v1397, 65535
    %v1430 = vand.u32 %v1398, 65535
    %v1431 = vxor.u32 %v1335, %v1399
    %v1432 = vxor.u32 %v1336, %v1400
    %v1433 = vxor.u32 %v1337, %v1401
    %v1434 = vxor.u32 %v1338, %v1402
    %v1435 = vxor.u32 %v1339, %v1403
    %v1436 = vxor.u32 %v1340, %v1404
    %v1437 = vxor.u32 %v1341, %v1405
    %v1438 = vxor.u32 %v1342, %v1406
    %v1439 = vxor.u32 %v1343, %v1407
    %v1440 = vxor.u32 %v1344, %v1408
    %v1441 = vxor.u32 %v1345, %v1409
    %v1442 = vxor.u32 %v1346, %v1410
    %v1443 = vxor.u32 %v1347, %v1411
    %v1444 = vxor.u32 %v1348, %v1412
    %v1445 = vxor.u32 %v1349, %v1413
    %v1446 = vxor.u32 %v1350, %v1414
    %v1447 = vxor.u32 %v1351, %v1415
    %v1448 = vxor.u32 %v1352, %v1416
    %v1449 = vxor.u32 %v1353, %v1417
    %v1450 = vxor.u32 %v1354, %v1418
    %v1451 = vxor.u32 %v1355, %v1419
    %v1452 = vxor.u32 %v1356, %v1420
    %v1453 = vxor.u32 %v1357, %v1421
    %v1454 = vxor.u32 %v1358, %v1422
    %v1455 = vxor.u32 %v1359, %v1423
    %v1456 = vxor.u32 %v1360, %v1424
    %v1457 = vxor.u32 %v1361, %v1425
    %v1458 = vxor.u32 %v1362, %v1426
    %v1459 = vxor.u32 %v1363, %v1427
    %v1460 = vxor.u32 %v1364, %v1428
    %v1461 = vxor.u32 %v1365, %v1429
    %v1462 = vxor.u32 %v1366, %v1430
    %v1463 = vand.u32 %v1431, 16777215
    %v1464 = vand.u32 %v1432, 16777215
    %v1465 = vand.u32 %v1433, 16777215
    %v1466 = vand.u32 %v1434, 16777215
    %v1467 = vand.u32 %v1435, 16777215
    %v1468 = vand.u32 %v1436, 16777215
    %v1469 = vand.u32 %v1437, 16777215
    %v1470 = vand.u32 %v1438, 16777215
    %v1471 = vand.u32 %v1439, 16777215
    %v1472 = vand.u32 %v1440, 16777215
    %v1473 = vand.u32 %v1441, 16777215
    %v1474 = vand.u32 %v1442, 16777215
    %v1475 = vand.u32 %v1443, 16777215
    %v1476 = vand.u32 %v1444, 16777215
    %v1477 = vand.u32 %v1445, 16777215
    %v1478 = vand.u32 %v1446, 16777215
    %v1479 = vand.u32 %v1447, 16777215
    %v1480 = vand.u32 %v1448, 16777215
    %v1481 = vand.u32 %v1449, 16777215
    %v1482 = vand.u32 %v1450, 16777215
    %v1483 = vand.u32 %v1451, 16777215
    %v1484 = vand.u32 %v1452, 16777215
    %v1485 = vand.u32 %v1453, 16777215
    %v1486 = vand.u32 %v1454, 16777215
    %v1487 = vand.u32 %v1455, 16777215
    %v1488 = vand.u32 %v1456, 16777215
    %v1489 = vand.u32 %v1457, 16777215
    %v1490 = vand.u32 %v1458, 16777215
    %v1491 = vand.u32 %v1459, 16777215
    %v1492 = vand.u32 %v1460, 16777215
    %v1493 = vand.u32 %v1461, 16777215
    %v1494 = vand.u32 %v1462, 16777215
    %vm1495 = vcmp.lt.s32.totalorder %v1463, 1677721
    %vm1496 = vcmp.lt.s32.totalorder %v1464, 1677721
    %vm1497 = vcmp.lt.s32.totalorder %v1465, 1677721
    %vm1498 = vcmp.lt.s32.totalorder %v1466, 1677721
    %vm1499 = vcmp.lt.s32.totalorder %v1467, 1677721
    %vm1500 = vcmp.lt.s32.totalorder %v1468, 1677721
    %vm1501 = vcmp.lt.s32.totalorder %v1469, 1677721
    %vm1502 = vcmp.lt.s32.totalorder %v1470, 1677721
    %vm1503 = vcmp.lt.s32.totalorder %v1471, 1677721
    %vm1504 = vcmp.lt.s32.totalorder %v1472, 1677721
    %vm1505 = vcmp.lt.s32.totalorder %v1473, 1677721
    %vm1506 = vcmp.lt.s32.totalorder %v1474, 1677721
    %vm1507 = vcmp.lt.s32.totalorder %v1475, 1677721
    %vm1508 = vcmp.lt.s32.totalorder %v1476, 1677721
    %vm1509 = vcmp.lt.s32.totalorder %v1477, 1677721
    %vm1510 = vcmp.lt.s32.totalorder %v1478, 1677721
    %vm1511 = vcmp.lt.s32.totalorder %v1479, 1677721
    %vm1512 = vcmp.lt.s32.totalorder %v1480, 1677721
    %vm1513 = vcmp.lt.s32.totalorder %v1481, 1677721
    %vm1514 = vcmp.lt.s32.totalorder %v1482, 1677721
    %vm1515 = vcmp.lt.s32.totalorder %v1483, 1677721
    %vm1516 = vcmp.lt.s32.totalorder %v1484, 1677721
    %vm1517 = vcmp.lt.s32.totalorder %v1485, 1677721
    %vm1518 = vcmp.lt.s32.totalorder %v1486, 1677721
    %vm1519 = vcmp.lt.s32.totalorder %v1487, 1677721
    %vm1520 = vcmp.lt.s32.totalorder %v1488, 1677721
    %vm1521 = vcmp.lt.s32.totalorder %v1489, 1677721
    %vm1522 = vcmp.lt.s32.totalorder %v1490, 1677721
    %vm1523 = vcmp.lt.s32.totalorder %v1491, 1677721
    %vm1524 = vcmp.lt.s32.totalorder %v1492, 1677721
    %vm1525 = vcmp.lt.s32.totalorder %v1493, 1677721
    %vm1526 = vcmp.lt.s32.totalorder %v1494, 1677721
    %v1527 = vmul.f32 %v757, %v948
    %v1528 = vmul.f32 %v759, %v949
    %v1529 = vmul.f32 %v761, %v950
    %v1530 = vmul.f32 %v763, %v951
    %v1531 = vmul.f32 %v765, %v952
    %v1532 = vmul.f32 %v767, %v953
    %v1533 = vmul.f32 %v769, %v954
    %v1534 = vmul.f32 %v771, %v955
    %v1535 = vmul.f32 %v773, %v956
    %v1536 = vmul.f32 %v775, %v957
    %v1537 = vmul.f32 %v777, %v958
    %v1538 = vmul.f32 %v779, %v959
    %v1539 = vmul.f32 %v781, %v960
    %v1540 = vmul.f32 %v783, %v961
    %v1541 = vmul.f32 %v785, %v962
    %v1542 = vmul.f32 %v787, %v963
    %v1543 = vmul.f32 %v789, %v964
    %v1544 = vmul.f32 %v791, %v965
    %v1545 = vmul.f32 %v793, %v966
    %v1546 = vmul.f32 %v795, %v967
    %v1547 = vmul.f32 %v797, %v968
    %v1548 = vmul.f32 %v799, %v969
    %v1549 = vmul.f32 %v801, %v970
    %v1550 = vmul.f32 %v803, %v971
    %v1551 = vmul.f32 %v805, %v972
    %v1552 = vmul.f32 %v807, %v973
    %v1553 = vmul.f32 %v809, %v974
    %v1554 = vmul.f32 %v811, %v975
    %v1555 = vmul.f32 %v813, %v976
    %v1556 = vmul.f32 %v815, %v977
    %v1557 = vmul.f32 %v817, %v978
    %v1558 = vmul.f32 %v819, %v979
    %v1559 = vsel %vm1495, %v1527, 0.0
    %v1560 = vsel %vm1496, %v1528, 0.0
    %v1561 = vsel %vm1497, %v1529, 0.0
    %v1562 = vsel %vm1498, %v1530, 0.0
    %v1563 = vsel %vm1499, %v1531, 0.0
    %v1564 = vsel %vm1500, %v1532, 0.0
    %v1565 = vsel %vm1501, %v1533, 0.0
    %v1566 = vsel %vm1502, %v1534, 0.0
    %v1567 = vsel %vm1503, %v1535, 0.0
    %v1568 = vsel %vm1504, %v1536, 0.0
    %v1569 = vsel %vm1505, %v1537, 0.0
    %v1570 = vsel %vm1506, %v1538, 0.0
    %v1571 = vsel %vm1507, %v1539, 0.0
    %v1572 = vsel %vm1508, %v1540, 0.0
    %v1573 = vsel %vm1509, %v1541, 0.0
    %v1574 = vsel %vm1510, %v1542, 0.0
    %v1575 = vsel %vm1511, %v1543, 0.0
    %v1576 = vsel %vm1512, %v1544, 0.0
    %v1577 = vsel %vm1513, %v1545, 0.0
    %v1578 = vsel %vm1514, %v1546, 0.0
    %v1579 = vsel %vm1515, %v1547, 0.0
    %v1580 = vsel %vm1516, %v1548, 0.0
    %v1581 = vsel %vm1517, %v1549, 0.0
    %v1582 = vsel %vm1518, %v1550, 0.0
    %v1583 = vsel %vm1519, %v1551, 0.0
    %v1584 = vsel %vm1520, %v1552, 0.0
    %v1585 = vsel %vm1521, %v1553, 0.0
    %v1586 = vsel %vm1522, %v1554, 0.0
    %v1587 = vsel %vm1523, %v1555, 0.0
    %v1588 = vsel %vm1524, %v1556, 0.0
    %v1589 = vsel %vm1525, %v1557, 0.0
    %v1590 = vsel %vm1526, %v1558, 0.0
    %v1591 = vpack.c.bf16 %v1559, %v1559
    %v1592 = vpack.c.bf16 %v1560, %v1560
    %v1593 = vpack.c.bf16 %v1561, %v1561
    %v1594 = vpack.c.bf16 %v1562, %v1562
    %v1595 = vpack.c.bf16 %v1563, %v1563
    %v1596 = vpack.c.bf16 %v1564, %v1564
    %v1597 = vpack.c.bf16 %v1565, %v1565
    %v1598 = vpack.c.bf16 %v1566, %v1566
    %v1599 = vpack.c.bf16 %v1567, %v1567
    %v1600 = vpack.c.bf16 %v1568, %v1568
    %v1601 = vpack.c.bf16 %v1569, %v1569
    %v1602 = vpack.c.bf16 %v1570, %v1570
    %v1603 = vpack.c.bf16 %v1571, %v1571
    %v1604 = vpack.c.bf16 %v1572, %v1572
    %v1605 = vpack.c.bf16 %v1573, %v1573
    %v1606 = vpack.c.bf16 %v1574, %v1574
    %v1607 = vpack.c.bf16 %v1575, %v1575
    %v1608 = vpack.c.bf16 %v1576, %v1576
    %v1609 = vpack.c.bf16 %v1577, %v1577
    %v1610 = vpack.c.bf16 %v1578, %v1578
    %v1611 = vpack.c.bf16 %v1579, %v1579
    %v1612 = vpack.c.bf16 %v1580, %v1580
    %v1613 = vpack.c.bf16 %v1581, %v1581
    %v1614 = vpack.c.bf16 %v1582, %v1582
    %v1615 = vpack.c.bf16 %v1583, %v1583
    %v1616 = vpack.c.bf16 %v1584, %v1584
    %v1617 = vpack.c.bf16 %v1585, %v1585
    %v1618 = vpack.c.bf16 %v1586, %v1586
    %v1619 = vpack.c.bf16 %v1587, %v1587
    %v1620 = vpack.c.bf16 %v1588, %v1588
    %v1621 = vpack.c.bf16 %v1589, %v1589
    %v1622 = vpack.c.bf16 %v1590, %v1590
    %v1623 = vpack.c.bf16 %v127, %v127
    %v1624 = vpack.c.bf16 %v128, %v128
    %v1625 = vpack.c.bf16 %v129, %v129
    %v1626 = vpack.c.bf16 %v130, %v130
    %v1627 = vpack.c.bf16 %v131, %v131
    %v1628 = vpack.c.bf16 %v132, %v132
    %v1629 = vpack.c.bf16 %v133, %v133
    %v1630 = vpack.c.bf16 %v134, %v134
    %v1631 = vpack.c.bf16 %v135, %v135
    %v1632 = vpack.c.bf16 %v136, %v136
    %v1633 = vpack.c.bf16 %v137, %v137
    %v1634 = vpack.c.bf16 %v138, %v138
    %v1635 = vpack.c.bf16 %v139, %v139
    %v1636 = vpack.c.bf16 %v140, %v140
    %v1637 = vpack.c.bf16 %v141, %v141
    %v1638 = vpack.c.bf16 %v142, %v142
    %v1639 = vpack.c.bf16 %v143, %v143
    %v1640 = vpack.c.bf16 %v144, %v144
    %v1641 = vpack.c.bf16 %v145, %v145
    %v1642 = vpack.c.bf16 %v146, %v146
    %v1643 = vpack.c.bf16 %v147, %v147
    %v1644 = vpack.c.bf16 %v148, %v148
    %v1645 = vpack.c.bf16 %v149, %v149
    %v1646 = vpack.c.bf16 %v150, %v150
    %v1647 = vpack.c.bf16 %v151, %v151
    %v1648 = vpack.c.bf16 %v152, %v152
    %v1649 = vpack.c.bf16 %v153, %v153
    %v1650 = vpack.c.bf16 %v154, %v154
    %v1651 = vpack.c.bf16 %v155, %v155
    %v1652 = vpack.c.bf16 %v156, %v156
    %v1653 = vpack.c.bf16 %v157, %v157
    %v1654 = vpack.c.bf16 %v158, %v158
    %v1663 = vunpack.c.l.b16 %v1591
    %v1664 = vunpack.c.l.b16 %v1592
    %v1665 = vunpack.c.l.b16 %v1593
    %v1666 = vunpack.c.l.b16 %v1594
    %v1667 = vunpack.c.l.b16 %v1595
    %v1668 = vunpack.c.l.b16 %v1596
    %v1669 = vunpack.c.l.b16 %v1597
    %v1670 = vunpack.c.l.b16 %v1598
    %v1671 = vpack.c.b16 %v1664, %v1663
    %v1672 = vpack.c.b16 %v1666, %v1665
    %v1673 = vpack.c.b16 %v1668, %v1667
    %v1674 = vpack.c.b16 %v1670, %v1669
    %v1683 = vunpack.c.l.b16 %v1623
    %v1684 = vunpack.c.l.b16 %v1624
    %v1685 = vunpack.c.l.b16 %v1625
    %v1686 = vunpack.c.l.b16 %v1626
    %v1687 = vunpack.c.l.b16 %v1627
    %v1688 = vunpack.c.l.b16 %v1628
    %v1689 = vunpack.c.l.b16 %v1629
    %v1690 = vunpack.c.l.b16 %v1630
    %v1691 = vpack.c.b16 %v1684, %v1683
    %v1692 = vpack.c.b16 %v1686, %v1685
    %v1693 = vpack.c.b16 %v1688, %v1687
    %v1694 = vpack.c.b16 %v1690, %v1689
    %v1700 = vsel %vm295, %v1671, 0
    %v1703 = vsel %vm295, %v1672, 0
    %v1706 = vsel %vm295, %v1673, 0
    %v1709 = vsel %vm295, %v1674, 0
    %1711 = vmatpush.bf16.msra.mxu0 0
    %1712 = vmatpush.bf16.msra.mxu0 0
    %1713 = vmatpush.bf16.msra.mxu0 0
    %1714 = vmatpush.bf16.msra.mxu0 0
    %1715 = vmatpush.bf16.msra.mxu0 %v1694
    %1716 = vmatpush.bf16.msra.mxu0 %v1693
    %1717 = vmatpush.bf16.msra.mxu0 %v1692
    %1718 = vmatpush.bf16.msra.mxu0 %v1691
    %1719 = vmatmul.bf16.gmra.mxu0 %v1700
    %v1720 = vpop.f32.mrf.mxu0
    %v1721 = vadd.f32 0.0, %v1720
    %v1722 = vpop.f32.mrf.mxu0
    %v1723 = vadd.f32 0.0, %v1722
    %1724 = vmatmul.bf16.gmra.mxu0 %v1703
    %v1725 = vpop.f32.mrf.mxu0
    %v1726 = vadd.f32 0.0, %v1725
    %v1727 = vpop.f32.mrf.mxu0
    %v1728 = vadd.f32 0.0, %v1727
    %1729 = vmatmul.bf16.gmra.mxu0 %v1706
    %v1730 = vpop.f32.mrf.mxu0
    %v1731 = vadd.f32 0.0, %v1730
    %v1732 = vpop.f32.mrf.mxu0
    %v1733 = vadd.f32 0.0, %v1732
    %1734 = vmatmul.bf16.gmra.mxu0 %v1709
    %v1735 = vpop.f32.mrf.mxu0
    %v1736 = vadd.f32 0.0, %v1735
    %v1737 = vpop.f32.mrf.mxu0
    %v1738 = vadd.f32 0.0, %v1737
    %1739 = vdwg.mxu0
    %v1748 = vunpack.c.l.b16 %v1599
    %v1749 = vunpack.c.l.b16 %v1600
    %v1750 = vunpack.c.l.b16 %v1601
    %v1751 = vunpack.c.l.b16 %v1602
    %v1752 = vunpack.c.l.b16 %v1603
    %v1753 = vunpack.c.l.b16 %v1604
    %v1754 = vunpack.c.l.b16 %v1605
    %v1755 = vunpack.c.l.b16 %v1606
    %v1756 = vpack.c.b16 %v1749, %v1748
    %v1757 = vpack.c.b16 %v1751, %v1750
    %v1758 = vpack.c.b16 %v1753, %v1752
    %v1759 = vpack.c.b16 %v1755, %v1754
    %v1768 = vunpack.c.l.b16 %v1631
    %v1769 = vunpack.c.l.b16 %v1632
    %v1770 = vunpack.c.l.b16 %v1633
    %v1771 = vunpack.c.l.b16 %v1634
    %v1772 = vunpack.c.l.b16 %v1635
    %v1773 = vunpack.c.l.b16 %v1636
    %v1774 = vunpack.c.l.b16 %v1637
    %v1775 = vunpack.c.l.b16 %v1638
    %v1776 = vpack.c.b16 %v1769, %v1768
    %v1777 = vpack.c.b16 %v1771, %v1770
    %v1778 = vpack.c.b16 %v1773, %v1772
    %v1779 = vpack.c.b16 %v1775, %v1774
    %v1785 = vsel %vm295, %v1756, 0
    %v1788 = vsel %vm295, %v1757, 0
    %v1791 = vsel %vm295, %v1758, 0
    %v1794 = vsel %vm295, %v1759, 0
    %1796 = vmatpush.bf16.msra.mxu0 0
    %1797 = vmatpush.bf16.msra.mxu0 0
    %1798 = vmatpush.bf16.msra.mxu0 0
    %1799 = vmatpush.bf16.msra.mxu0 0
    %1800 = vmatpush.bf16.msra.mxu0 %v1779
    %1801 = vmatpush.bf16.msra.mxu0 %v1778
    %1802 = vmatpush.bf16.msra.mxu0 %v1777
    %1803 = vmatpush.bf16.msra.mxu0 %v1776
    %1804 = vmatmul.bf16.gmra.mxu0 %v1785
    %v1805 = vpop.f32.mrf.mxu0
    %v1806 = vadd.f32 0.0, %v1805
    %v1807 = vpop.f32.mrf.mxu0
    %v1808 = vadd.f32 0.0, %v1807
    %1809 = vmatmul.bf16.gmra.mxu0 %v1788
    %v1810 = vpop.f32.mrf.mxu0
    %v1811 = vadd.f32 0.0, %v1810
    %v1812 = vpop.f32.mrf.mxu0
    %v1813 = vadd.f32 0.0, %v1812
    %1814 = vmatmul.bf16.gmra.mxu0 %v1791
    %v1815 = vpop.f32.mrf.mxu0
    %v1816 = vadd.f32 0.0, %v1815
    %v1817 = vpop.f32.mrf.mxu0
    %v1818 = vadd.f32 0.0, %v1817
    %1819 = vmatmul.bf16.gmra.mxu0 %v1794
    %v1820 = vpop.f32.mrf.mxu0
    %v1821 = vadd.f32 0.0, %v1820
    %v1822 = vpop.f32.mrf.mxu0
    %v1823 = vadd.f32 0.0, %v1822
    %1824 = vdwg.mxu0
    %v1833 = vunpack.c.l.b16 %v1607
    %v1834 = vunpack.c.l.b16 %v1608
    %v1835 = vunpack.c.l.b16 %v1609
    %v1836 = vunpack.c.l.b16 %v1610
    %v1837 = vunpack.c.l.b16 %v1611
    %v1838 = vunpack.c.l.b16 %v1612
    %v1839 = vunpack.c.l.b16 %v1613
    %v1840 = vunpack.c.l.b16 %v1614
    %v1841 = vpack.c.b16 %v1834, %v1833
    %v1842 = vpack.c.b16 %v1836, %v1835
    %v1843 = vpack.c.b16 %v1838, %v1837
    %v1844 = vpack.c.b16 %v1840, %v1839
    %v1853 = vunpack.c.l.b16 %v1639
    %v1854 = vunpack.c.l.b16 %v1640
    %v1855 = vunpack.c.l.b16 %v1641
    %v1856 = vunpack.c.l.b16 %v1642
    %v1857 = vunpack.c.l.b16 %v1643
    %v1858 = vunpack.c.l.b16 %v1644
    %v1859 = vunpack.c.l.b16 %v1645
    %v1860 = vunpack.c.l.b16 %v1646
    %v1861 = vpack.c.b16 %v1854, %v1853
    %v1862 = vpack.c.b16 %v1856, %v1855
    %v1863 = vpack.c.b16 %v1858, %v1857
    %v1864 = vpack.c.b16 %v1860, %v1859
    %v1870 = vsel %vm295, %v1841, 0
    %v1873 = vsel %vm295, %v1842, 0
    %v1876 = vsel %vm295, %v1843, 0
    %v1879 = vsel %vm295, %v1844, 0
    %1881 = vmatpush.bf16.msra.mxu0 0
    %1882 = vmatpush.bf16.msra.mxu0 0
    %1883 = vmatpush.bf16.msra.mxu0 0
    %1884 = vmatpush.bf16.msra.mxu0 0
    %1885 = vmatpush.bf16.msra.mxu0 %v1864
    %1886 = vmatpush.bf16.msra.mxu0 %v1863
    %1887 = vmatpush.bf16.msra.mxu0 %v1862
    %1888 = vmatpush.bf16.msra.mxu0 %v1861
    %1889 = vmatmul.bf16.gmra.mxu0 %v1870
    %v1890 = vpop.f32.mrf.mxu0
    %v1891 = vadd.f32 0.0, %v1890
    %v1892 = vpop.f32.mrf.mxu0
    %v1893 = vadd.f32 0.0, %v1892
    %1894 = vmatmul.bf16.gmra.mxu0 %v1873
    %v1895 = vpop.f32.mrf.mxu0
    %v1896 = vadd.f32 0.0, %v1895
    %v1897 = vpop.f32.mrf.mxu0
    %v1898 = vadd.f32 0.0, %v1897
    %1899 = vmatmul.bf16.gmra.mxu0 %v1876
    %v1900 = vpop.f32.mrf.mxu0
    %v1901 = vadd.f32 0.0, %v1900
    %v1902 = vpop.f32.mrf.mxu0
    %v1903 = vadd.f32 0.0, %v1902
    %1904 = vmatmul.bf16.gmra.mxu0 %v1879
    %v1905 = vpop.f32.mrf.mxu0
    %v1906 = vadd.f32 0.0, %v1905
    %v1907 = vpop.f32.mrf.mxu0
    %v1908 = vadd.f32 0.0, %v1907
    %1909 = vdwg.mxu0
    %v1918 = vunpack.c.l.b16 %v1615
    %v1919 = vunpack.c.l.b16 %v1616
    %v1920 = vunpack.c.l.b16 %v1617
    %v1921 = vunpack.c.l.b16 %v1618
    %v1922 = vunpack.c.l.b16 %v1619
    %v1923 = vunpack.c.l.b16 %v1620
    %v1924 = vunpack.c.l.b16 %v1621
    %v1925 = vunpack.c.l.b16 %v1622
    %v1926 = vpack.c.b16 %v1919, %v1918
    %v1927 = vpack.c.b16 %v1921, %v1920
    %v1928 = vpack.c.b16 %v1923, %v1922
    %v1929 = vpack.c.b16 %v1925, %v1924
    %v1938 = vunpack.c.l.b16 %v1647
    %v1939 = vunpack.c.l.b16 %v1648
    %v1940 = vunpack.c.l.b16 %v1649
    %v1941 = vunpack.c.l.b16 %v1650
    %v1942 = vunpack.c.l.b16 %v1651
    %v1943 = vunpack.c.l.b16 %v1652
    %v1944 = vunpack.c.l.b16 %v1653
    %v1945 = vunpack.c.l.b16 %v1654
    %v1946 = vpack.c.b16 %v1939, %v1938
    %v1947 = vpack.c.b16 %v1941, %v1940
    %v1948 = vpack.c.b16 %v1943, %v1942
    %v1949 = vpack.c.b16 %v1945, %v1944
    %v1955 = vsel %vm295, %v1926, 0
    %v1958 = vsel %vm295, %v1927, 0
    %v1961 = vsel %vm295, %v1928, 0
    %v1964 = vsel %vm295, %v1929, 0
    %1966 = vmatpush.bf16.msra.mxu0 0
    %1967 = vmatpush.bf16.msra.mxu0 0
    %1968 = vmatpush.bf16.msra.mxu0 0
    %1969 = vmatpush.bf16.msra.mxu0 0
    %1970 = vmatpush.bf16.msra.mxu0 %v1949
    %1971 = vmatpush.bf16.msra.mxu0 %v1948
    %1972 = vmatpush.bf16.msra.mxu0 %v1947
    %1973 = vmatpush.bf16.msra.mxu0 %v1946
    %1974 = vmatmul.bf16.gmra.mxu0 %v1955
    %v1975 = vpop.f32.mrf.mxu0
    %v1976 = vadd.f32 0.0, %v1975
    %v1977 = vpop.f32.mrf.mxu0
    %v1978 = vadd.f32 0.0, %v1977
    %1979 = vmatmul.bf16.gmra.mxu0 %v1958
    %v1980 = vpop.f32.mrf.mxu0
    %v1981 = vadd.f32 0.0, %v1980
    %v1982 = vpop.f32.mrf.mxu0
    %v1983 = vadd.f32 0.0, %v1982
    %1984 = vmatmul.bf16.gmra.mxu0 %v1961
    %v1985 = vpop.f32.mrf.mxu0
    %v1986 = vadd.f32 0.0, %v1985
    %v1987 = vpop.f32.mrf.mxu0
    %v1988 = vadd.f32 0.0, %v1987
    %1989 = vmatmul.bf16.gmra.mxu0 %v1964
    %v1990 = vpop.f32.mrf.mxu0
    %v1991 = vadd.f32 0.0, %v1990
    %v1992 = vpop.f32.mrf.mxu0
    %v1993 = vadd.f32 0.0, %v1992
    %1994 = vdwg.mxu0
    %1995 = vst.msk [vmem:[#allocation8] sm:$0xff] %vm295, %v1721
    %1996 = vst.msk [vmem:[#allocation8 + $0x8] sm:$0xff] %vm295, %v1723
    %1997 = vst.msk [vmem:[#allocation8 + $0x10] sm:$0xff] %vm295, %v1726
    %1998 = vst.msk [vmem:[#allocation8 + $0x18] sm:$0xff] %vm295, %v1728
    %1999 = vst.msk [vmem:[#allocation8 + $0x20] sm:$0xff] %vm295, %v1731
    %2000 = vst.msk [vmem:[#allocation8 + $0x28] sm:$0xff] %vm295, %v1733
    %2001 = vst.msk [vmem:[#allocation8 + $0x30] sm:$0xff] %vm295, %v1736
    %2002 = vst.msk [vmem:[#allocation8 + $0x38] sm:$0xff] %vm295, %v1738
    %2003 = vst.msk [vmem:[#allocation8 + $0x40] sm:$0xff] %vm295, %v1806
    %2004 = vst.msk [vmem:[#allocation8 + $0x48] sm:$0xff] %vm295, %v1808
    %2005 = vst.msk [vmem:[#allocation8 + $0x50] sm:$0xff] %vm295, %v1811
    %2006 = vst.msk [vmem:[#allocation8 + $0x58] sm:$0xff] %vm295, %v1813
    %2007 = vst.msk [vmem:[#allocation8 + $0x60] sm:$0xff] %vm295, %v1816
    %2008 = vst.msk [vmem:[#allocation8 + $0x68] sm:$0xff] %vm295, %v1818
    %2009 = vst.msk [vmem:[#allocation8 + $0x70] sm:$0xff] %vm295, %v1821
    %2010 = vst.msk [vmem:[#allocation8 + $0x78] sm:$0xff] %vm295, %v1823
    %2011 = vst.msk [vmem:[#allocation8 + $0x80] sm:$0xff] %vm295, %v1891
    %2012 = vst.msk [vmem:[#allocation8 + $0x88] sm:$0xff] %vm295, %v1893
    %2013 = vst.msk [vmem:[#allocation8 + $0x90] sm:$0xff] %vm295, %v1896
    %2014 = vst.msk [vmem:[#allocation8 + $0x98] sm:$0xff] %vm295, %v1898
    %2015 = vst.msk [vmem:[#allocation8 + $0xa0] sm:$0xff] %vm295, %v1901
    %2016 = vst.msk [vmem:[#allocation8 + $0xa8] sm:$0xff] %vm295, %v1903
    %2017 = vst.msk [vmem:[#allocation8 + $0xb0] sm:$0xff] %vm295, %v1906
    %2018 = vst.msk [vmem:[#allocation8 + $0xb8] sm:$0xff] %vm295, %v1908
    %2019 = vst.msk [vmem:[#allocation8 + $0xc0] sm:$0xff] %vm295, %v1976
    %2020 = vst.msk [vmem:[#allocation8 + $0xc8] sm:$0xff] %vm295, %v1978
    %2021 = vst.msk [vmem:[#allocation8 + $0xd0] sm:$0xff] %vm295, %v1981
    %2022 = vst.msk [vmem:[#allocation8 + $0xd8] sm:$0xff] %vm295, %v1983
    %2023 = vst.msk [vmem:[#allocation8 + $0xe0] sm:$0xff] %vm295, %v1986
    %2024 = vst.msk [vmem:[#allocation8 + $0xe8] sm:$0xff] %vm295, %v1988
    %2025 = vst.msk [vmem:[#allocation8 + $0xf0] sm:$0xff] %vm295, %v1991
    %2026 = vst.msk [vmem:[#allocation8 + $0xf8] sm:$0xff] %vm295, %v1993
    // Predicated region
    $region26: #{tpu_custom_call.1} parent=1 // pred_check
      _
    $region27: #{tpu_custom_call.1} parent=1 // pred_check_branch
      %2028 = sbr.rel (0) target = $region29
    $region28: #{tpu_custom_call.1} parent=1 // pred_region
      %2030 = vsyncadd [#allocation4], 0
      %s2031 = sshll.u32 [#allocation8], 4
      %s2032 = int_to_ptr.vmem [resolvable:$true] %s2031
      %s2033 = sshll.u32 %s3, 4
      %s2034 = int_to_ptr.hbm [resolvable:$true] %s2033
      %2039 = dma.vmem_to_hbm [thread:$0]  %s2032, 4096, %s2034, [#allocation4], 128, 128, 8
    $region29: #{tpu_custom_call.1} parent=1 // pred_fallthru
      _
    // Predicated region
    $region30: #{tpu_custom_call.1} parent=1 // pred_check
      _
    $region31: #{tpu_custom_call.1} parent=1 // pred_check_branch
      %2041 = sbr.rel (0) target = $region33
    $region32: #{tpu_custom_call.1} parent=1 // pred_region
      %2043 = dma.done [#allocation4], 4096
    $region33: #{tpu_custom_call.1} parent=1 // pred_fallthru
      _
    %2044 = vsyncpa [#allocation3], 1
    %2045 = vsyncpa [#allocation6], 1
    %2046 = vsyncpa [#allocation4], 1

</llo_original>
